<compile_context>
chip_gen: v5e
topology: v5e:2x2
jax: 0.10.0
libtpu: 0.0.40
codegen_flags: <defaults>
</compile_context>

<pallas_src>
import jax
import jax.numpy as jnp
from jax.experimental import pallas as pl
from jax.experimental.pallas import tpu as pltpu

BN_EPS = 1e-5
LRELU_SLOPE = 0.2
LANE = 128          # lane width: channel (N) and contraction (K) dims padded to this
SUBLANE = 8
TM_TARGET = 256     # im2col rows per grid step (tunable; sweep 256-1024 for big inputs)


def _round_up(x, m):
    return (x + m - 1) // m * m


# ----------------------------------------------------------------------------
# Pass A: conv-as-matmul (bf16 operands on the MXU, f32 accumulation) plus
# per-tile BatchNorm partial statistics (sum, sum of squares) in the epilogue.
# ----------------------------------------------------------------------------
def _matmul_stats_kernel(p_ref, w_ref, y_ref, ps_ref, pss_ref):
    # p_ref: (TM, Kp) bf16, w_ref: (Kp, Cp) bf16, y_ref: (TM, Cp) f32
    y = jnp.dot(p_ref[...], w_ref[...], preferred_element_type=jnp.float32)
    y_ref[...] = y
    cp = y.shape[1]
    s = jnp.sum(y, axis=0, keepdims=True)         # (1, Cp)
    ss = jnp.sum(y * y, axis=0, keepdims=True)    # (1, Cp)
    # Sublane-replicate so the partial-stat tile is an aligned (8, 128) store.
    ps_ref[...] = jnp.broadcast_to(s, (SUBLANE, cp))
    pss_ref[...] = jnp.broadcast_to(ss, (SUBLANE, cp))


# ----------------------------------------------------------------------------
# Pass B: folded BatchNorm (y * scale + shift) + LeakyReLU(0.2).
# ----------------------------------------------------------------------------
def _scale_shift_lrelu_kernel(y_ref, s_ref, t_ref, o_ref):
    z = y_ref[...] * s_ref[...] + t_ref[...]
    o_ref[...] = jnp.where(z > 0, z, LRELU_SLOPE * z).astype(o_ref.dtype)


def fused_conv_bn_lrelu(patches, w_mat, gamma, beta, *, tm_target=TM_TARGET):
    """conv (im2col matmul) + BatchNorm (batch stats) + LeakyReLU(0.2).

    patches: (M, K) f32, w_mat: (K, Cout) f32, gamma/beta: (Cout,) f32.
    Returns (M, Cout) f32.
    """
    M, K = patches.shape
    Cout = w_mat.shape[1]

    Kp = _round_up(K, LANE)                 # MXU-aligned contraction dim
    Cp = _round_up(Cout, LANE)              # lane-dense output channels
    TM = min(tm_target, _round_up(M, SUBLANE))
    Mp = _round_up(M, TM)
    nt = Mp // TM

    # Zero-pad and cast the MXU operands to bf16 (accumulation stays f32).
    p_bf = jnp.pad(patches.astype(jnp.bfloat16), ((0, Mp - M), (0, Kp - K)))
    w_bf = jnp.pad(w_mat.astype(jnp.bfloat16), ((0, Kp - K), (0, Cp - Cout)))

    flops_a = 2 * Mp * Kp * Cp
    bytes_a = (Mp * Kp * 2 + nt * Kp * Cp * 2 + Mp * Cp * 4
               + 2 * nt * SUBLANE * Cp * 4)

    y, psum, psumsq = pl.pallas_call(
        _matmul_stats_kernel,
        out_shape=(
            jax.ShapeDtypeStruct((Mp, Cp), jnp.float32),
            jax.ShapeDtypeStruct((nt * SUBLANE, Cp), jnp.float32),
            jax.ShapeDtypeStruct((nt * SUBLANE, Cp), jnp.float32),
        ),
        grid=(nt,),
        in_specs=[
            pl.BlockSpec((TM, Kp), lambda i: (i, 0)),
            pl.BlockSpec((Kp, Cp), lambda i: (0, 0)),
        ],
        out_specs=[
            pl.BlockSpec((TM, Cp), lambda i: (i, 0)),
            pl.BlockSpec((SUBLANE, Cp), lambda i: (i, 0)),
            pl.BlockSpec((SUBLANE, Cp), lambda i: (i, 0)),
        ],
        compiler_params=pltpu.CompilerParams(
            dimension_semantics=("parallel",)),
        cost_estimate=pl.CostEstimate(flops=flops_a, transcendentals=0,
                                      bytes_accessed=bytes_a),
    )(p_bf, w_bf)

    # Per-channel BN fold (tiny plain-JAX): zero-padded rows contribute nothing
    # to sum/sumsq, so divide by the true M.  Keep accumulators in f32 and
    # clamp var >= 0 (E[y^2]-E[y]^2 cancellation guard).
    s_tot = jnp.sum(psum.reshape(nt, SUBLANE, Cp)[:, 0, :], axis=0)
    ss_tot = jnp.sum(psumsq.reshape(nt, SUBLANE, Cp)[:, 0, :], axis=0)
    inv_m = 1.0 / float(M)
    mu = s_tot * inv_m
    var = jnp.maximum(ss_tot * inv_m - mu * mu, 0.0)
    g = jnp.pad(gamma.astype(jnp.float32), (0, Cp - Cout))
    b = jnp.pad(beta.astype(jnp.float32), (0, Cp - Cout))
    scale = g * jax.lax.rsqrt(var + BN_EPS)
    shift = b - mu * scale
    scale2 = scale.reshape(1, Cp)
    shift2 = shift.reshape(1, Cp)

    flops_b = 4 * Mp * Cp
    bytes_b = 2 * Mp * Cp * 4 + 2 * Cp * 4

    out = pl.pallas_call(
        _scale_shift_lrelu_kernel,
        out_shape=jax.ShapeDtypeStruct((Mp, Cp), jnp.float32),
        grid=(nt,),
        in_specs=[
            pl.BlockSpec((TM, Cp), lambda i: (i, 0)),
            pl.BlockSpec((1, Cp), lambda i: (0, 0)),
            pl.BlockSpec((1, Cp), lambda i: (0, 0)),
        ],
        out_specs=pl.BlockSpec((TM, Cp), lambda i: (i, 0)),
        compiler_params=pltpu.CompilerParams(
            dimension_semantics=("parallel",)),
        cost_estimate=pl.CostEstimate(flops=flops_b, transcendentals=0,
                                      bytes_accessed=bytes_b),
    )(y, scale2, shift2)

    return out[:M, :Cout]


# ----------------------------------------------------------------------------
# Plain-JAX glue: im2col, spectral-norm weight prep, parameter init
# ----------------------------------------------------------------------------
def _im2col(x_nhwc, k, stride, pad):
    """(N,H,W,C) -> (N*Ho*Wo, k*k*C) with K ordered as (kh, kw, Cin)."""
    N, H, W, C = x_nhwc.shape
    xp = jnp.pad(x_nhwc, ((0, 0), (pad, pad), (pad, pad), (0, 0)))
    Ho = (H + 2 * pad - k) // stride + 1
    Wo = (W + 2 * pad - k) // stride + 1
    taps = []
    for kh in range(k):
        for kw in range(k):
            taps.append(
                jax.lax.slice(
                    xp,
                    (0, kh, kw, 0),
                    (N, kh + stride * (Ho - 1) + 1, kw + stride * (Wo - 1) + 1, C),
                    (1, stride, stride, 1),
                )
            )
    patches = jnp.stack(taps, axis=3)  # (N, Ho, Wo, k*k, C)
    return patches.reshape(N * Ho * Wo, k * k * C), (N, Ho, Wo)


def _spectral_normalize(w_oihw, n_iter=1, eps=1e-12):
    """torch.nn.utils.spectral_norm semantics: W / sigma via power iteration on (Cout, -1)."""
    cout = w_oihw.shape[0]
    w_mat = w_oihw.reshape(cout, -1)
    u = jnp.ones((cout,), jnp.float32)
    u = u / (jnp.linalg.norm(u) + eps)
    v = w_mat.T @ u
    v = v / (jnp.linalg.norm(v) + eps)
    for _ in range(n_iter):
        v = w_mat.T @ u
        v = v / (jnp.linalg.norm(v) + eps)
        u = w_mat @ v
        u = u / (jnp.linalg.norm(u) + eps)
    sigma = u @ (w_mat @ v)
    return w_oihw / sigma


def init_down_block_params(key, in_planes, out_planes):
    k1, k2 = jax.random.split(key)
    b1 = 1.0 / float(in_planes * 3 * 3) ** 0.5   # torch conv default init bound
    b2 = 1.0 / float(out_planes * 4 * 4) ** 0.5
    w1 = jax.random.uniform(k1, (out_planes, in_planes, 3, 3), jnp.float32, -b1, b1)
    w2 = jax.random.uniform(k2, (out_planes, out_planes, 4, 4), jnp.float32, -b2, b2)
    return {
        "w1": _spectral_normalize(w1),
        "w2": _spectral_normalize(w2),
        "gamma1": jnp.ones((out_planes,), jnp.float32),
        "beta1": jnp.zeros((out_planes,), jnp.float32),
        "gamma2": jnp.ones((out_planes,), jnp.float32),
        "beta2": jnp.zeros((out_planes,), jnp.float32),
    }


# ----------------------------------------------------------------------------
# DownBlock forward (NCHW in / NCHW out, like PyTorch)
# ----------------------------------------------------------------------------
def down_block_forward(params, x_nchw):
    x = jnp.transpose(x_nchw, (0, 2, 3, 1)).astype(jnp.float32)  # NCHW -> NHWC
    cout = params["w1"].shape[0]

    # conv 3x3 / s1 / p1  + BN + LeakyReLU(0.2)
    p1, (n, h1, w1s) = _im2col(x, 3, 1, 1)
    wm1 = jnp.transpose(params["w1"], (2, 3, 1, 0)).reshape(-1, cout)  # (kh,kw,Cin,Cout)->(K,Cout)
    y1 = fused_conv_bn_lrelu(p1, wm1, params["gamma1"], params["beta1"])
    y1 = y1.reshape(n, h1, w1s, cout)

    # TODO(synk): replace the HBM im2col + y1 round-trip with in-kernel shifted
    # matmuls over NHWC halo tiles to remove the 9x/16x HBM read amplification.

    # conv 4x4 / s2 / p1  + BN + LeakyReLU(0.2)
    p2, (n, h2, w2s) = _im2col(y1, 4, 2, 1)
    wm2 = jnp.transpose(params["w2"], (2, 3, 1, 0)).reshape(-1, cout)
    y2 = fused_conv_bn_lrelu(p2, wm2, params["gamma2"], params["beta2"])
    y2 = y2.reshape(n, h2, w2s, cout)

    return jnp.transpose(y2, (0, 3, 1, 2))  # NHWC -> NCHW


# ----------------------------------------------------------------------------
# Pure-JAX references (for correctness check)
# ----------------------------------------------------------------------------
def _ref_forward(params, x_nchw, conv_operand_dtype=None):
    def maybe_round(a):
        if conv_operand_dtype is None:
            return a
        return a.astype(conv_operand_dtype).astype(jnp.float32)

    def conv(x, w, stride, pad):
        return jax.lax.conv_general_dilated(
            maybe_round(x), maybe_round(w), (stride, stride),
            ((pad, pad), (pad, pad)),
            dimension_numbers=("NCHW", "OIHW", "NCHW"))

    def bn_lrelu(x, gamma, beta):
        mu = jnp.mean(x, axis=(0, 2, 3), keepdims=True)
        var = jnp.mean((x - mu) ** 2, axis=(0, 2, 3), keepdims=True)
        z = (x - mu) * jax.lax.rsqrt(var + BN_EPS)
        z = z * gamma.reshape(1, -1, 1, 1) + beta.reshape(1, -1, 1, 1)
        return jnp.where(z > 0, z, LRELU_SLOPE * z)

    y = bn_lrelu(conv(x_nchw, params["w1"], 1, 1), params["gamma1"], params["beta1"])
    y = bn_lrelu(conv(y, params["w2"], 2, 1), params["gamma2"], params["beta2"])
    return y


if __name__ == "__main__":
    key = jax.random.PRNGKey(0)
    kp, kx = jax.random.split(key)

    in_planes, out_planes = 4, 8
    params = init_down_block_params(kp, in_planes, out_planes)
    x = jax.random.normal(kx, (2, in_planes, 16, 16), jnp.float32)

    out = jax.jit(down_block_forward)(params, x)
    out = jax.block_until_ready(out)
    assert out.shape == (2, out_planes, 8, 8), out.shape

    # Tight check: reference with the same bf16 rounding of conv operands that
    # the kernel deliberately applies (MXU bf16 operands, f32 accumulation).
    ref_bf16 = _ref_forward(params, x, conv_operand_dtype=jnp.bfloat16)
    err_tight = float(jnp.max(jnp.abs(out - ref_bf16)))
    assert jnp.allclose(out, ref_bf16, atol=5e-3, rtol=5e-3), f"max abs err {err_tight}"

    # Loose sanity check against the pure-f32 reference (allows bf16 quant noise).
    ref_f32 = _ref_forward(params, x)
    err_loose = float(jnp.max(jnp.abs(out - ref_f32)))
    assert jnp.allclose(out, ref_f32, atol=1e-1, rtol=1e-1), f"max abs err {err_loose}"

    print("KERNEL_OK")
</pallas_src>

<mosaic_0001>
module attributes {stable_mosaic.version = 11 : i64} {
  func.func @_matmul_stats_kernel(%arg0: i32, %arg1: memref<256x128xbf16, #tpu.memory_space<vmem>>, %arg2: memref<128x128xbf16, #tpu.memory_space<vmem>>, %arg3: memref<256x128xf32, #tpu.memory_space<vmem>>, %arg4: memref<8x128xf32, #tpu.memory_space<vmem>>, %arg5: memref<8x128xf32, #tpu.memory_space<vmem>>) attributes {dimension_semantics = [#tpu.dimension_semantics<parallel>], iteration_bounds = array<i64: 2>, scalar_prefetch = 0 : i64, scratch_operands = 0 : i64, tpu.core_type = #tpu.core_type<tc>, window_params = [{transform_indices = @transform_0, window_bounds = array<i64: 256, 128>}, {pipeline_mode = #tpu.pipeline_mode<synchronous>, transform_indices = @transform_1, window_bounds = array<i64: 128, 128>}, {transform_indices = @transform_2, window_bounds = array<i64: 256, 128>}, {transform_indices = @transform_3, window_bounds = array<i64: 8, 128>}, {transform_indices = @transform_4, window_bounds = array<i64: 8, 128>}]} {
    %c0 = arith.constant 0 : index
    %c0_0 = arith.constant 0 : index
    %0 = vector.load %arg1[%c0, %c0_0] : memref<256x128xbf16, #tpu.memory_space<vmem>>, vector<256x128xbf16>
    %c0_1 = arith.constant 0 : index
    %c0_2 = arith.constant 0 : index
    %1 = vector.load %arg2[%c0_1, %c0_2] : memref<128x128xbf16, #tpu.memory_space<vmem>>, vector<128x128xbf16>
    %cst = arith.constant dense<0.000000e+00> : vector<256x128xf32>
    %2 = tpu.matmul %0, %1, %cst {dimension_numbers = #tpu.dot_dimension_numbers<[1], [0], [0], [1], [0, 0, 1, 1], [], []>} : vector<256x128xbf16>, vector<128x128xbf16>, vector<256x128xf32> -> vector<256x128xf32>
    %c0_3 = arith.constant 0 : index
    %c0_4 = arith.constant 0 : index
    %3 = vector.load %arg3[%c0_3, %c0_4] : memref<256x128xf32, #tpu.memory_space<vmem>>, vector<256x128xf32>
    tpu.vector_store %arg3[%c0_3, %c0_4], %2 {strides = array<i32>} : memref<256x128xf32, #tpu.memory_space<vmem>>, vector<256x128xf32>,
    %cst_5 = arith.constant dense<0.000000e+00> : vector<128xf32>
    %4 = vector.multi_reduction <add>, %2, %cst_5 [0] : vector<256x128xf32> to vector<128xf32>
    %5 = vector.shape_cast %4 : vector<128xf32> to vector<1x128xf32>
    %6 = arith.mulf %2, %2 : vector<256x128xf32>
    %cst_6 = arith.constant dense<0.000000e+00> : vector<128xf32>
    %7 = vector.multi_reduction <add>, %6, %cst_6 [0] : vector<256x128xf32> to vector<128xf32>
    %8 = vector.shape_cast %7 : vector<128xf32> to vector<1x128xf32>
    %9 = vector.shape_cast %5 : vector<1x128xf32> to vector<1x128xf32>
    %10 = vector.broadcast %9 : vector<1x128xf32> to vector<8x128xf32>
    %c0_7 = arith.constant 0 : index
    %c0_8 = arith.constant 0 : index
    %11 = vector.load %arg4[%c0_7, %c0_8] : memref<8x128xf32, #tpu.memory_space<vmem>>, vector<8x128xf32>
    tpu.vector_store %arg4[%c0_7, %c0_8], %10 {strides = array<i32>} : memref<8x128xf32, #tpu.memory_space<vmem>>, vector<8x128xf32>,
    %12 = vector.shape_cast %8 : vector<1x128xf32> to vector<1x128xf32>
    %13 = vector.broadcast %12 : vector<1x128xf32> to vector<8x128xf32>
    %c0_9 = arith.constant 0 : index
    %c0_10 = arith.constant 0 : index
    %14 = vector.load %arg5[%c0_9, %c0_10] : memref<8x128xf32, #tpu.memory_space<vmem>>, vector<8x128xf32>
    tpu.vector_store %arg5[%c0_9, %c0_10], %13 {strides = array<i32>} : memref<8x128xf32, #tpu.memory_space<vmem>>, vector<8x128xf32>,
    return
  }
  func.func @transform_0(%arg0: i32) -> (i32, i32) {
    %c0_i32 = arith.constant 0 : i32
    %c0_i32_0 = arith.constant 0 : i32
    return %arg0, %c0_i32 : i32, i32
  }
  func.func @transform_1(%arg0: i32) -> (i32, i32) {
    %c0_i32 = arith.constant 0 : i32
    %c0_i32_0 = arith.constant 0 : i32
    %c0_i32_1 = arith.constant 0 : i32
    return %c0_i32, %c0_i32_0 : i32, i32
  }
  func.func @transform_2(%arg0: i32) -> (i32, i32) {
    %c0_i32 = arith.constant 0 : i32
    %c0_i32_0 = arith.constant 0 : i32
    return %arg0, %c0_i32 : i32, i32
  }
  func.func @transform_3(%arg0: i32) -> (i32, i32) {
    %c0_i32 = arith.constant 0 : i32
    %c0_i32_0 = arith.constant 0 : i32
    return %arg0, %c0_i32 : i32, i32
  }
  func.func @transform_4(%arg0: i32) -> (i32, i32) {
    %c0_i32 = arith.constant 0 : i32
    %c0_i32_0 = arith.constant 0 : i32
    return %arg0, %c0_i32 : i32, i32
  }
}

module attributes {stable_mosaic.version = 11 : i64} {
  func.func @_scale_shift_lrelu_kernel(%arg0: i32, %arg1: memref<256x128xf32, #tpu.memory_space<vmem>>, %arg2: memref<1x128xf32, #tpu.memory_space<vmem>>, %arg3: memref<1x128xf32, #tpu.memory_space<vmem>>, %arg4: memref<256x128xf32, #tpu.memory_space<vmem>>) attributes {dimension_semantics = [#tpu.dimension_semantics<parallel>], iteration_bounds = array<i64: 2>, scalar_prefetch = 0 : i64, scratch_operands = 0 : i64, tpu.core_type = #tpu.core_type<tc>, window_params = [{transform_indices = @transform_0, window_bounds = array<i64: 256, 128>}, {pipeline_mode = #tpu.pipeline_mode<synchronous>, transform_indices = @transform_1, window_bounds = array<i64: 1, 128>}, {pipeline_mode = #tpu.pipeline_mode<synchronous>, transform_indices = @transform_2, window_bounds = array<i64: 1, 128>}, {transform_indices = @transform_3, window_bounds = array<i64: 256, 128>}]} {
    %c0 = arith.constant 0 : index
    %c0_0 = arith.constant 0 : index
    %0 = vector.load %arg1[%c0, %c0_0] : memref<256x128xf32, #tpu.memory_space<vmem>>, vector<256x128xf32>
    %c0_1 = arith.constant 0 : index
    %c0_2 = arith.constant 0 : index
    %1 = vector.load %arg2[%c0_1, %c0_2] : memref<1x128xf32, #tpu.memory_space<vmem>>, vector<1x128xf32>
    %2 = vector.broadcast %1 : vector<1x128xf32> to vector<256x128xf32>
    %3 = arith.mulf %0, %2 : vector<256x128xf32>
    %c0_3 = arith.constant 0 : index
    %c0_4 = arith.constant 0 : index
    %4 = vector.load %arg3[%c0_3, %c0_4] : memref<1x128xf32, #tpu.memory_space<vmem>>, vector<1x128xf32>
    %5 = vector.broadcast %4 : vector<1x128xf32> to vector<256x128xf32>
    %6 = arith.addf %3, %5 : vector<256x128xf32>
    %cst = arith.constant 0.000000e+00 : f32
    %7 = vector.broadcast %cst : f32 to vector<256x128xf32>
    %8 = arith.cmpf ogt, %6, %7 : vector<256x128xf32>
    %cst_5 = arith.constant 2.000000e-01 : f32
    %9 = vector.broadcast %cst_5 : f32 to vector<256x128xf32>
    %10 = arith.mulf %9, %6 : vector<256x128xf32>
    %11 = arith.select %8, %6, %10 : vector<256x128xi1>, vector<256x128xf32>
    %c0_6 = arith.constant 0 : index
    %c0_7 = arith.constant 0 : index
    %12 = vector.load %arg4[%c0_6, %c0_7] : memref<256x128xf32, #tpu.memory_space<vmem>>, vector<256x128xf32>
    tpu.vector_store %arg4[%c0_6, %c0_7], %11 {strides = array<i32>} : memref<256x128xf32, #tpu.memory_space<vmem>>, vector<256x128xf32>,
    return
  }
  func.func @transform_0(%arg0: i32) -> (i32, i32) {
    %c0_i32 = arith.constant 0 : i32
    %c0_i32_0 = arith.constant 0 : i32
    return %arg0, %c0_i32 : i32, i32
  }
  func.func @transform_1(%arg0: i32) -> (i32, i32) {
    %c0_i32 = arith.constant 0 : i32
    %c0_i32_0 = arith.constant 0 : i32
    %c0_i32_1 = arith.constant 0 : i32
    return %c0_i32, %c0_i32_0 : i32, i32
  }
  func.func @transform_2(%arg0: i32) -> (i32, i32) {
    %c0_i32 = arith.constant 0 : i32
    %c0_i32_0 = arith.constant 0 : i32
    %c0_i32_1 = arith.constant 0 : i32
    return %c0_i32, %c0_i32_0 : i32, i32
  }
  func.func @transform_3(%arg0: i32) -> (i32, i32) {
    %c0_i32 = arith.constant 0 : i32
    %c0_i32_0 = arith.constant 0 : i32
    return %arg0, %c0_i32 : i32, i32
  }
}

module attributes {stable_mosaic.version = 11 : i64} {
  func.func @_matmul_stats_kernel(%arg0: i32, %arg1: memref<128x128xbf16, #tpu.memory_space<vmem>>, %arg2: memref<128x128xbf16, #tpu.memory_space<vmem>>, %arg3: memref<128x128xf32, #tpu.memory_space<vmem>>, %arg4: memref<8x128xf32, #tpu.memory_space<vmem>>, %arg5: memref<8x128xf32, #tpu.memory_space<vmem>>) attributes {dimension_semantics = [#tpu.dimension_semantics<parallel>], iteration_bounds = array<i64: 1>, scalar_prefetch = 0 : i64, scratch_operands = 0 : i64, tpu.core_type = #tpu.core_type<tc>, window_params = [{transform_indices = @transform_0, window_bounds = array<i64: 128, 128>}, {pipeline_mode = #tpu.pipeline_mode<synchronous>, transform_indices = @transform_1, window_bounds = array<i64: 128, 128>}, {transform_indices = @transform_2, window_bounds = array<i64: 128, 128>}, {transform_indices = @transform_3, window_bounds = array<i64: 8, 128>}, {transform_indices = @transform_4, window_bounds = array<i64: 8, 128>}]} {
    %c0 = arith.constant 0 : index
    %c0_0 = arith.constant 0 : index
    %0 = vector.load %arg1[%c0, %c0_0] : memref<128x128xbf16, #tpu.memory_space<vmem>>, vector<128x128xbf16>
    %c0_1 = arith.constant 0 : index
    %c0_2 = arith.constant 0 : index
    %1 = vector.load %arg2[%c0_1, %c0_2] : memref<128x128xbf16, #tpu.memory_space<vmem>>, vector<128x128xbf16>
    %cst = arith.constant dense<0.000000e+00> : vector<128x128xf32>
    %2 = tpu.matmul %0, %1, %cst {dimension_numbers = #tpu.dot_dimension_numbers<[1], [0], [0], [1], [0, 0, 1, 1], [], []>} : vector<128x128xbf16>, vector<128x128xbf16>, vector<128x128xf32> -> vector<128x128xf32>
    %c0_3 = arith.constant 0 : index
    %c0_4 = arith.constant 0 : index
    %3 = vector.load %arg3[%c0_3, %c0_4] : memref<128x128xf32, #tpu.memory_space<vmem>>, vector<128x128xf32>
    tpu.vector_store %arg3[%c0_3, %c0_4], %2 {strides = array<i32>} : memref<128x128xf32, #tpu.memory_space<vmem>>, vector<128x128xf32>,
    %cst_5 = arith.constant dense<0.000000e+00> : vector<128xf32>
    %4 = vector.multi_reduction <add>, %2, %cst_5 [0] : vector<128x128xf32> to vector<128xf32>
    %5 = vector.shape_cast %4 : vector<128xf32> to vector<1x128xf32>
    %6 = arith.mulf %2, %2 : vector<128x128xf32>
    %cst_6 = arith.constant dense<0.000000e+00> : vector<128xf32>
    %7 = vector.multi_reduction <add>, %6, %cst_6 [0] : vector<128x128xf32> to vector<128xf32>
    %8 = vector.shape_cast %7 : vector<128xf32> to vector<1x128xf32>
    %9 = vector.shape_cast %5 : vector<1x128xf32> to vector<1x128xf32>
    %10 = vector.broadcast %9 : vector<1x128xf32> to vector<8x128xf32>
    %c0_7 = arith.constant 0 : index
    %c0_8 = arith.constant 0 : index
    %11 = vector.load %arg4[%c0_7, %c0_8] : memref<8x128xf32, #tpu.memory_space<vmem>>, vector<8x128xf32>
    tpu.vector_store %arg4[%c0_7, %c0_8], %10 {strides = array<i32>} : memref<8x128xf32, #tpu.memory_space<vmem>>, vector<8x128xf32>,
    %12 = vector.shape_cast %8 : vector<1x128xf32> to vector<1x128xf32>
    %13 = vector.broadcast %12 : vector<1x128xf32> to vector<8x128xf32>
    %c0_9 = arith.constant 0 : index
    %c0_10 = arith.constant 0 : index
    %14 = vector.load %arg5[%c0_9, %c0_10] : memref<8x128xf32, #tpu.memory_space<vmem>>, vector<8x128xf32>
    tpu.vector_store %arg5[%c0_9, %c0_10], %13 {strides = array<i32>} : memref<8x128xf32, #tpu.memory_space<vmem>>, vector<8x128xf32>,
    return
  }
  func.func @transform_0(%arg0: i32) -> (i32, i32) {
    %c0_i32 = arith.constant 0 : i32
    %c0_i32_0 = arith.constant 0 : i32
    return %arg0, %c0_i32 : i32, i32
  }
  func.func @transform_1(%arg0: i32) -> (i32, i32) {
    %c0_i32 = arith.constant 0 : i32
    %c0_i32_0 = arith.constant 0 : i32
    %c0_i32_1 = arith.constant 0 : i32
    return %c0_i32, %c0_i32_0 : i32, i32
  }
  func.func @transform_2(%arg0: i32) -> (i32, i32) {
    %c0_i32 = arith.constant 0 : i32
    %c0_i32_0 = arith.constant 0 : i32
    return %arg0, %c0_i32 : i32, i32
  }
  func.func @transform_3(%arg0: i32) -> (i32, i32) {
    %c0_i32 = arith.constant 0 : i32
    %c0_i32_0 = arith.constant 0 : i32
    return %arg0, %c0_i32 : i32, i32
  }
  func.func @transform_4(%arg0: i32) -> (i32, i32) {
    %c0_i32 = arith.constant 0 : i32
    %c0_i32_0 = arith.constant 0 : i32
    return %arg0, %c0_i32 : i32, i32
  }
}

module attributes {stable_mosaic.version = 11 : i64} {
  func.func @_scale_shift_lrelu_kernel(%arg0: i32, %arg1: memref<128x128xf32, #tpu.memory_space<vmem>>, %arg2: memref<1x128xf32, #tpu.memory_space<vmem>>, %arg3: memref<1x128xf32, #tpu.memory_space<vmem>>, %arg4: memref<128x128xf32, #tpu.memory_space<vmem>>) attributes {dimension_semantics = [#tpu.dimension_semantics<parallel>], iteration_bounds = array<i64: 1>, scalar_prefetch = 0 : i64, scratch_operands = 0 : i64, tpu.core_type = #tpu.core_type<tc>, window_params = [{transform_indices = @transform_0, window_bounds = array<i64: 128, 128>}, {pipeline_mode = #tpu.pipeline_mode<synchronous>, transform_indices = @transform_1, window_bounds = array<i64: 1, 128>}, {pipeline_mode = #tpu.pipeline_mode<synchronous>, transform_indices = @transform_2, window_bounds = array<i64: 1, 128>}, {transform_indices = @transform_3, window_bounds = array<i64: 128, 128>}]} {
    %c0 = arith.constant 0 : index
    %c0_0 = arith.constant 0 : index
    %0 = vector.load %arg1[%c0, %c0_0] : memref<128x128xf32, #tpu.memory_space<vmem>>, vector<128x128xf32>
    %c0_1 = arith.constant 0 : index
    %c0_2 = arith.constant 0 : index
    %1 = vector.load %arg2[%c0_1, %c0_2] : memref<1x128xf32, #tpu.memory_space<vmem>>, vector<1x128xf32>
    %2 = vector.broadcast %1 : vector<1x128xf32> to vector<128x128xf32>
    %3 = arith.mulf %0, %2 : vector<128x128xf32>
    %c0_3 = arith.constant 0 : index
    %c0_4 = arith.constant 0 : index
    %4 = vector.load %arg3[%c0_3, %c0_4] : memref<1x128xf32, #tpu.memory_space<vmem>>, vector<1x128xf32>
    %5 = vector.broadcast %4 : vector<1x128xf32> to vector<128x128xf32>
    %6 = arith.addf %3, %5 : vector<128x128xf32>
    %cst = arith.constant 0.000000e+00 : f32
    %7 = vector.broadcast %cst : f32 to vector<128x128xf32>
    %8 = arith.cmpf ogt, %6, %7 : vector<128x128xf32>
    %cst_5 = arith.constant 2.000000e-01 : f32
    %9 = vector.broadcast %cst_5 : f32 to vector<128x128xf32>
    %10 = arith.mulf %9, %6 : vector<128x128xf32>
    %11 = arith.select %8, %6, %10 : vector<128x128xi1>, vector<128x128xf32>
    %c0_6 = arith.constant 0 : index
    %c0_7 = arith.constant 0 : index
    %12 = vector.load %arg4[%c0_6, %c0_7] : memref<128x128xf32, #tpu.memory_space<vmem>>, vector<128x128xf32>
    tpu.vector_store %arg4[%c0_6, %c0_7], %11 {strides = array<i32>} : memref<128x128xf32, #tpu.memory_space<vmem>>, vector<128x128xf32>,
    return
  }
  func.func @transform_0(%arg0: i32) -> (i32, i32) {
    %c0_i32 = arith.constant 0 : i32
    %c0_i32_0 = arith.constant 0 : i32
    return %arg0, %c0_i32 : i32, i32
  }
  func.func @transform_1(%arg0: i32) -> (i32, i32) {
    %c0_i32 = arith.constant 0 : i32
    %c0_i32_0 = arith.constant 0 : i32
    %c0_i32_1 = arith.constant 0 : i32
    return %c0_i32, %c0_i32_0 : i32, i32
  }
  func.func @transform_2(%arg0: i32) -> (i32, i32) {
    %c0_i32 = arith.constant 0 : i32
    %c0_i32_0 = arith.constant 0 : i32
    %c0_i32_1 = arith.constant 0 : i32
    return %c0_i32, %c0_i32_0 : i32, i32
  }
  func.func @transform_3(%arg0: i32) -> (i32, i32) {
    %c0_i32 = arith.constant 0 : i32
    %c0_i32_0 = arith.constant 0 : i32
    return %arg0, %c0_i32 : i32, i32
  }
}

</mosaic_0001>

<llo_original>
// kernel: down_block_forward.5
$region0: #{down_block_forward.5}
  #allocation0 [shape = 'u32[]', space=smem, size = 0x4, offset = 0x4, fixed_abs, tag = 'smem constant byte address 0x4 - core index']
  #allocation1 [shape = 'u32[72,128]{1,0:T(1,128)}', space=vmem, size = 0x9000, scoped, tag = 'internal scratch']
  %s0 = inlined_call_operand.vmem [shape: f32[512,128], index: 0, kind: input, shape index: {}]
  %s1 = inlined_call_operand.vmem [shape: f32[1,128], index: 1, kind: input, shape index: {}]
  %s2 = inlined_call_operand.vmem [shape: f32[1,128], index: 2, kind: input, shape index: {}]
  %s3 = inlined_call_operand.vmem [shape: f32[512,128], index: 3, kind: output, shape index: {}]
  %s4 = sld [smem:[#allocation0]]
  $region45: #{down_block_forward.5} parent=0
    _
  %s6 = ssub.s32 1, %s4
  %s7 = scalar_select 0, %s6, %s4
  loop: start=0, step=1, limit=4
  $region2: #{down_block_forward.5} parent=0 // loop_pre_header
    _
  $region3: #{down_block_forward.5} parent=0 // loop_header
    %s9 = sphi 0, %s13
    %p10 = scmp.ge.s32.totalorder %s9, 4
    %s19 = sphi 0, %s21
    %s22 = sphi 0, %s19
    %s23 = sphi 0, %s22
    %s39 = sphi 0, %s23
    %s43 = sphi 0, %s43
    %s45 = sphi 0, %s43
    %s46 = sphi 0, %s45
    %s60 = sphi 0, %s46
    %s64 = sphi 0, %s64
    %s66 = sphi 0, %s64
    %s67 = sphi 0, %s66
    %s81 = sphi 0, %s67
    %s87 = sphi 0, %s89
    %s90 = sphi 0, %s87
    %s91 = sphi 0, %s90
    %s107 = sphi 0, %s91
  $region4: #{down_block_forward.5} parent=0 // loop_header_branch
    %12 = sbr.rel (%p10) target = $region8
  $region5: #{down_block_forward.5} parent=0 // loop_body
    %s14 = ssub.s32 %s9, 1
    %s15 = ssub.s32 %s9, 2
    %s16 = sadd.s32 %s9, 1
    %s17 = ssub.s32 %s9, %s16
    %p18 = scmp.eq.s32.totalorder %s17, 0
    %s20 = sadd.s32 %s19, 1
    %s21 = scalar_select %p18, %s19, %s20
    %p24 = pneg %p18
    %p25 = scmp.eq.s32.totalorder %s9, 1
    %p26 = por %p24, %p25
    %p27 = scmp.ne.s32.totalorder %s19, %s22
    %p28 = scmp.eq.s32.totalorder %s9, 0
    %p29 = por %p27, %p28
    %p30 = scmp.ne.s32.totalorder %s19, %s22
    %p31 = scmp.eq.s32.totalorder %s14, 1
    %p32 = por %p30, %p31
    %p33 = scmp.ne.s32.totalorder %s22, %s23
    %p34 = scmp.eq.s32.totalorder %s14, 0
    %p35 = por %p33, %p34
    %p36 = scmp.ne.s32.totalorder %s22, %s23
    %p37 = scmp.eq.s32.totalorder %s15, 1
    %p38 = por %p36, %p37
    %p40 = scmp.ne.s32.totalorder %s23, %s39
    %p41 = scmp.eq.s32.totalorder %s15, 0
    %p42 = por %p40, %p41
    %s44 = sadd.s32 %s43, 1
    %p47 = scmp.eq.s32.totalorder %s9, 1
    %p48 = scmp.ne.s32.totalorder %s43, %s45
    %p49 = scmp.eq.s32.totalorder %s9, 0
    %p50 = por %p48, %p49
    %p51 = scmp.ne.s32.totalorder %s43, %s45
    %p52 = scmp.eq.s32.totalorder %s14, 1
    %p53 = por %p51, %p52
    %p54 = scmp.ne.s32.totalorder %s45, %s46
    %p55 = scmp.eq.s32.totalorder %s14, 0
    %p56 = por %p54, %p55
    %p57 = scmp.ne.s32.totalorder %s45, %s46
    %p58 = scmp.eq.s32.totalorder %s15, 1
    %p59 = por %p57, %p58
    %p61 = scmp.ne.s32.totalorder %s46, %s60
    %p62 = scmp.eq.s32.totalorder %s15, 0
    %p63 = por %p61, %p62
    %s65 = sadd.s32 %s64, 1
    %p68 = scmp.eq.s32.totalorder %s9, 1
    %p69 = scmp.ne.s32.totalorder %s64, %s66
    %p70 = scmp.eq.s32.totalorder %s9, 0
    %p71 = por %p69, %p70
    %p72 = scmp.ne.s32.totalorder %s64, %s66
    %p73 = scmp.eq.s32.totalorder %s14, 1
    %p74 = por %p72, %p73
    %p75 = scmp.ne.s32.totalorder %s66, %s67
    %p76 = scmp.eq.s32.totalorder %s14, 0
    %p77 = por %p75, %p76
    %p78 = scmp.ne.s32.totalorder %s66, %s67
    %p79 = scmp.eq.s32.totalorder %s15, 1
    %p80 = por %p78, %p79
    %p82 = scmp.ne.s32.totalorder %s67, %s81
    %p83 = scmp.eq.s32.totalorder %s15, 0
    %p84 = por %p82, %p83
    %s85 = ssub.s32 %s9, %s16
    %p86 = scmp.eq.s32.totalorder %s85, 0
    %s88 = sadd.s32 %s87, 1
    %s89 = scalar_select %p86, %s87, %s88
    %p92 = pneg %p86
    %p93 = scmp.eq.s32.totalorder %s9, 1
    %p94 = por %p92, %p93
    %p95 = scmp.ne.s32.totalorder %s87, %s90
    %p96 = scmp.eq.s32.totalorder %s9, 0
    %p97 = por %p95, %p96
    %p98 = scmp.ne.s32.totalorder %s87, %s90
    %p99 = scmp.eq.s32.totalorder %s14, 1
    %p100 = por %p98, %p99
    %p101 = scmp.ne.s32.totalorder %s90, %s91
    %p102 = scmp.eq.s32.totalorder %s14, 0
    %p103 = por %p101, %p102
    %p104 = scmp.ne.s32.totalorder %s90, %s91
    %p105 = scmp.eq.s32.totalorder %s15, 1
    %p106 = por %p104, %p105
    %p108 = scmp.ne.s32.totalorder %s91, %s107
    %p109 = scmp.eq.s32.totalorder %s15, 0
    %p110 = por %p108, %p109
    %p111 = scmp.le.s32.totalorder 1, %s9
    %p112 = scmp.lt.s32.totalorder %s9, 3
    %p113 = pnand %p111, %p112
    %p114 = pneg %p113
    // Predicated region
    $region9: #{down_block_forward.5} parent=5 // pred_check
      _
    $region10: #{down_block_forward.5} parent=5 // pred_check_branch
      %116 = sbr.rel (%p113) target = $region12
    $region11: #{down_block_forward.5} parent=5 // pred_region
      %s117 = ssub.s32 %s9, 1
      // Predicated region
      $region13: #{down_block_forward.5} parent=11 // pred_check
        %p118 = pneg %p56
      $region14: #{down_block_forward.5} parent=11 // pred_check_branch
        %120 = sbr.rel (%p118) target = $region16
      $region15: #{down_block_forward.5} parent=11 // pred_region
        _
      $region16: #{down_block_forward.5} parent=11 // pred_fallthru
        _
      // Predicated region
      $region17: #{down_block_forward.5} parent=11 // pred_check
        %p121 = pneg %p77
      $region18: #{down_block_forward.5} parent=11 // pred_check_branch
        %123 = sbr.rel (%p121) target = $region20
      $region19: #{down_block_forward.5} parent=11 // pred_region
        _
      $region20: #{down_block_forward.5} parent=11 // pred_fallthru
        _
    $region12: #{down_block_forward.5} parent=5 // pred_fallthru
      _
    %p124 = scmp.lt.s32.totalorder %s9, 2
    // Predicated region
    $region21: #{down_block_forward.5} parent=5 // pred_check
      %p125 = pneg %p124
    $region22: #{down_block_forward.5} parent=5 // pred_check_branch
      %127 = sbr.rel (%p125) target = $region24
    $region23: #{down_block_forward.5} parent=5 // pred_region
      // Predicated region
      $region25: #{down_block_forward.5} parent=23 // pred_check
        %p128 = pneg %p29
      $region26: #{down_block_forward.5} parent=23 // pred_check_branch
        %130 = sbr.rel (%p128) target = $region28
      $region27: #{down_block_forward.5} parent=23 // pred_region
        %s131 = smul.u32 32, %s9
        %p132 = scmp.lt.s32.totalorder %s131, 63
        %s133 = scalar_select %p132, %s131, 63
        %s134 = smul.addr %s133, 8
        %s135 = scalar_lea.vmem %s0, %s134
        %s136 = smul.u32 32, %s9
      $region28: #{down_block_forward.5} parent=23 // pred_fallthru
        _
    $region24: #{down_block_forward.5} parent=5 // pred_fallthru
      _
    %p137 = scmp.le.s32.totalorder 1, %s9
    %p138 = scmp.lt.s32.totalorder %s9, 3
    %p139 = pnand %p137, %p138
    %p140 = pneg %p139
    // Predicated region
    $region29: #{down_block_forward.5} parent=5 // pred_check
      _
    $region30: #{down_block_forward.5} parent=5 // pred_check_branch
      %142 = sbr.rel (%p139) target = $region32
    $region31: #{down_block_forward.5} parent=5 // pred_region
      %s143 = ssub.s32 %s9, 1
      %s144 = smul.u32 32, %s14
      %p145 = scmp.lt.s32.totalorder %s144, 63
      %s146 = scalar_select %p145, %s144, 63
      %s147 = smul.addr %s146, 8
      %s148 = scalar_lea.vmem %s0, %s147
      %p149 = pneg %p35
      %p150 = pneg %p32
      %p151 = pneg %p56
      %p152 = pneg %p53
      %p153 = pneg %p77
      %p154 = pneg %p74
      %p155 = pneg %p103
      %p156 = pneg %p100
      %s157 = smul.u32 32, %s14
      %p158 = scmp.lt.s32.totalorder %s157, 63
      %s159 = scalar_select %p158, %s157, 63
      %s160 = smul.addr %s159, 8
      %s161 = scalar_lea.vmem %s3, %s160
      %s162 = smul.u32 32, %s14
      %p163 = scmp.lt.s32.totalorder %s162, 63
      %s164 = scalar_select %p163, %s162, 63
      %s165 = smul.addr %s164, 8
      %s166 = scalar_lea.vmem %s0, %s165
      %s167 = smul.u32 32, %s14
      %s168 = smul.u32 32, %s14
      %p169 = scmp.lt.s32.totalorder %s168, 63
      %s170 = scalar_select %p169, %s168, 63
      %s171 = smul.addr %s170, 8
      %s172 = scalar_lea.vmem %s3, %s171
      %s173 = smul.u32 32, %s14
      %v174 = vld [vmem:[%s166] sm:$0xff]
      %v175 = vld [vmem:[%s166 + $0x8] sm:$0xff]
      %v176 = vld [vmem:[%s166 + $0x10] sm:$0xff]
      %v177 = vld [vmem:[%s166 + $0x18] sm:$0xff]
      %v178 = vld [vmem:[%s166 + $0x20] sm:$0xff]
      %v179 = vld [vmem:[%s166 + $0x28] sm:$0xff]
      %v180 = vld [vmem:[%s166 + $0x30] sm:$0xff]
      %v181 = vld [vmem:[%s166 + $0x38] sm:$0xff]
      %v182 = vld [vmem:[%s166 + $0x40] sm:$0xff]
      %v183 = vld [vmem:[%s166 + $0x48] sm:$0xff]
      %v184 = vld [vmem:[%s166 + $0x50] sm:$0xff]
      %v185 = vld [vmem:[%s166 + $0x58] sm:$0xff]
      %v186 = vld [vmem:[%s166 + $0x60] sm:$0xff]
      %v187 = vld [vmem:[%s166 + $0x68] sm:$0xff]
      %v188 = vld [vmem:[%s166 + $0x70] sm:$0xff]
      %v189 = vld [vmem:[%s166 + $0x78] sm:$0xff]
      %v190 = vld [vmem:[%s166 + $0x80] sm:$0xff]
      %v191 = vld [vmem:[%s166 + $0x88] sm:$0xff]
      %v192 = vld [vmem:[%s166 + $0x90] sm:$0xff]
      %v193 = vld [vmem:[%s166 + $0x98] sm:$0xff]
      %v194 = vld [vmem:[%s166 + $0xa0] sm:$0xff]
      %v195 = vld [vmem:[%s166 + $0xa8] sm:$0xff]
      %v196 = vld [vmem:[%s166 + $0xb0] sm:$0xff]
      %v197 = vld [vmem:[%s166 + $0xb8] sm:$0xff]
      %v198 = vld [vmem:[%s166 + $0xc0] sm:$0xff]
      %v199 = vld [vmem:[%s166 + $0xc8] sm:$0xff]
      %v200 = vld [vmem:[%s166 + $0xd0] sm:$0xff]
      %v201 = vld [vmem:[%s166 + $0xd8] sm:$0xff]
      %v202 = vld [vmem:[%s166 + $0xe0] sm:$0xff]
      %v203 = vld [vmem:[%s166 + $0xe8] sm:$0xff]
      %v204 = vld [vmem:[%s166 + $0xf0] sm:$0xff]
      %v205 = vld [vmem:[%s166 + $0xf8] sm:$0xff]
      %v206 = vld [vmem:[%s1] sm:$0x1]
      %v208 = vperm.slane %v206, 0
      %v210 = vmul.f32 %v174, %v208
      %v211 = vmul.f32 %v175, %v208
      %v212 = vmul.f32 %v176, %v208
      %v213 = vmul.f32 %v177, %v208
      %v214 = vmul.f32 %v178, %v208
      %v215 = vmul.f32 %v179, %v208
      %v216 = vmul.f32 %v180, %v208
      %v217 = vmul.f32 %v181, %v208
      %v218 = vmul.f32 %v182, %v208
      %v219 = vmul.f32 %v183, %v208
      %v220 = vmul.f32 %v184, %v208
      %v221 = vmul.f32 %v185, %v208
      %v222 = vmul.f32 %v186, %v208
      %v223 = vmul.f32 %v187, %v208
      %v224 = vmul.f32 %v188, %v208
      %v225 = vmul.f32 %v189, %v208
      %v226 = vmul.f32 %v190, %v208
      %v227 = vmul.f32 %v191, %v208
      %v228 = vmul.f32 %v192, %v208
      %v229 = vmul.f32 %v193, %v208
      %v230 = vmul.f32 %v194, %v208
      %v231 = vmul.f32 %v195, %v208
      %v232 = vmul.f32 %v196, %v208
      %v233 = vmul.f32 %v197, %v208
      %v234 = vmul.f32 %v198, %v208
      %v235 = vmul.f32 %v199, %v208
      %v236 = vmul.f32 %v200, %v208
      %v237 = vmul.f32 %v201, %v208
      %v238 = vmul.f32 %v202, %v208
      %v239 = vmul.f32 %v203, %v208
      %v240 = vmul.f32 %v204, %v208
      %v241 = vmul.f32 %v205, %v208
      %v242 = vld [vmem:[%s2] sm:$0x1]
      %v244 = vperm.slane %v242, 0
      %v246 = vadd.f32 %v210, %v244
      %v247 = vadd.f32 %v211, %v244
      %v248 = vadd.f32 %v212, %v244
      %v249 = vadd.f32 %v213, %v244
      %v250 = vadd.f32 %v214, %v244
      %v251 = vadd.f32 %v215, %v244
      %v252 = vadd.f32 %v216, %v244
      %v253 = vadd.f32 %v217, %v244
      %v254 = vadd.f32 %v218, %v244
      %v255 = vadd.f32 %v219, %v244
      %v256 = vadd.f32 %v220, %v244
      %v257 = vadd.f32 %v221, %v244
      %v258 = vadd.f32 %v222, %v244
      %v259 = vadd.f32 %v223, %v244
      %v260 = vadd.f32 %v224, %v244
      %v261 = vadd.f32 %v225, %v244
      %v262 = vadd.f32 %v226, %v244
      %v263 = vadd.f32 %v227, %v244
      %v264 = vadd.f32 %v228, %v244
      %v265 = vadd.f32 %v229, %v244
      %v266 = vadd.f32 %v230, %v244
      %v267 = vadd.f32 %v231, %v244
      %v268 = vadd.f32 %v232, %v244
      %v269 = vadd.f32 %v233, %v244
      %v270 = vadd.f32 %v234, %v244
      %v271 = vadd.f32 %v235, %v244
      %v272 = vadd.f32 %v236, %v244
      %v273 = vadd.f32 %v237, %v244
      %v274 = vadd.f32 %v238, %v244
      %v275 = vadd.f32 %v239, %v244
      %v276 = vadd.f32 %v240, %v244
      %v277 = vadd.f32 %v241, %v244
      %vm278 = vcmp.gt.f32.partialorder %v246, 0.0
      %vm279 = vcmp.gt.f32.partialorder %v247, 0.0
      %vm280 = vcmp.gt.f32.partialorder %v248, 0.0
      %vm281 = vcmp.gt.f32.partialorder %v249, 0.0
      %vm282 = vcmp.gt.f32.partialorder %v250, 0.0
      %vm283 = vcmp.gt.f32.partialorder %v251, 0.0
      %vm284 = vcmp.gt.f32.partialorder %v252, 0.0
      %vm285 = vcmp.gt.f32.partialorder %v253, 0.0
      %vm286 = vcmp.gt.f32.partialorder %v254, 0.0
      %vm287 = vcmp.gt.f32.partialorder %v255, 0.0
      %vm288 = vcmp.gt.f32.partialorder %v256, 0.0
      %vm289 = vcmp.gt.f32.partialorder %v257, 0.0
      %vm290 = vcmp.gt.f32.partialorder %v258, 0.0
      %vm291 = vcmp.gt.f32.partialorder %v259, 0.0
      %vm292 = vcmp.gt.f32.partialorder %v260, 0.0
      %vm293 = vcmp.gt.f32.partialorder %v261, 0.0
      %vm294 = vcmp.gt.f32.partialorder %v262, 0.0
      %vm295 = vcmp.gt.f32.partialorder %v263, 0.0
      %vm296 = vcmp.gt.f32.partialorder %v264, 0.0
      %vm297 = vcmp.gt.f32.partialorder %v265, 0.0
      %vm298 = vcmp.gt.f32.partialorder %v266, 0.0
      %vm299 = vcmp.gt.f32.partialorder %v267, 0.0
      %vm300 = vcmp.gt.f32.partialorder %v268, 0.0
      %vm301 = vcmp.gt.f32.partialorder %v269, 0.0
      %vm302 = vcmp.gt.f32.partialorder %v270, 0.0
      %vm303 = vcmp.gt.f32.partialorder %v271, 0.0
      %vm304 = vcmp.gt.f32.partialorder %v272, 0.0
      %vm305 = vcmp.gt.f32.partialorder %v273, 0.0
      %vm306 = vcmp.gt.f32.partialorder %v274, 0.0
      %vm307 = vcmp.gt.f32.partialorder %v275, 0.0
      %vm308 = vcmp.gt.f32.partialorder %v276, 0.0
      %vm309 = vcmp.gt.f32.partialorder %v277, 0.0
      %v310 = vmul.f32 %v246, 0.2
      %v311 = vmul.f32 %v247, 0.2
      %v312 = vmul.f32 %v248, 0.2
      %v313 = vmul.f32 %v249, 0.2
      %v314 = vmul.f32 %v250, 0.2
      %v315 = vmul.f32 %v251, 0.2
      %v316 = vmul.f32 %v252, 0.2
      %v317 = vmul.f32 %v253, 0.2
      %v318 = vmul.f32 %v254, 0.2
      %v319 = vmul.f32 %v255, 0.2
      %v320 = vmul.f32 %v256, 0.2
      %v321 = vmul.f32 %v257, 0.2
      %v322 = vmul.f32 %v258, 0.2
      %v323 = vmul.f32 %v259, 0.2
      %v324 = vmul.f32 %v260, 0.2
      %v325 = vmul.f32 %v261, 0.2
      %v326 = vmul.f32 %v262, 0.2
      %v327 = vmul.f32 %v263, 0.2
      %v328 = vmul.f32 %v264, 0.2
      %v329 = vmul.f32 %v265, 0.2
      %v330 = vmul.f32 %v266, 0.2
      %v331 = vmul.f32 %v267, 0.2
      %v332 = vmul.f32 %v268, 0.2
      %v333 = vmul.f32 %v269, 0.2
      %v334 = vmul.f32 %v270, 0.2
      %v335 = vmul.f32 %v271, 0.2
      %v336 = vmul.f32 %v272, 0.2
      %v337 = vmul.f32 %v273, 0.2
      %v338 = vmul.f32 %v274, 0.2
      %v339 = vmul.f32 %v275, 0.2
      %v340 = vmul.f32 %v276, 0.2
      %v341 = vmul.f32 %v277, 0.2
      %v342 = vsel %vm278, %v246, %v310
      %v343 = vsel %vm279, %v247, %v311
      %v344 = vsel %vm280, %v248, %v312
      %v345 = vsel %vm281, %v249, %v313
      %v346 = vsel %vm282, %v250, %v314
      %v347 = vsel %vm283, %v251, %v315
      %v348 = vsel %vm284, %v252, %v316
      %v349 = vsel %vm285, %v253, %v317
      %v350 = vsel %vm286, %v254, %v318
      %v351 = vsel %vm287, %v255, %v319
      %v352 = vsel %vm288, %v256, %v320
      %v353 = vsel %vm289, %v257, %v321
      %v354 = vsel %vm290, %v258, %v322
      %v355 = vsel %vm291, %v259, %v323
      %v356 = vsel %vm292, %v260, %v324
      %v357 = vsel %vm293, %v261, %v325
      %v358 = vsel %vm294, %v262, %v326
      %v359 = vsel %vm295, %v263, %v327
      %v360 = vsel %vm296, %v264, %v328
      %v361 = vsel %vm297, %v265, %v329
      %v362 = vsel %vm298, %v266, %v330
      %v363 = vsel %vm299, %v267, %v331
      %v364 = vsel %vm300, %v268, %v332
      %v365 = vsel %vm301, %v269, %v333
      %v366 = vsel %vm302, %v270, %v334
      %v367 = vsel %vm303, %v271, %v335
      %v368 = vsel %vm304, %v272, %v336
      %v369 = vsel %vm305, %v273, %v337
      %v370 = vsel %vm306, %v274, %v338
      %v371 = vsel %vm307, %v275, %v339
      %v372 = vsel %vm308, %v276, %v340
      %v373 = vsel %vm309, %v277, %v341
      %374 = vst [vmem:[%s172] sm:$0xff] %v342
      %375 = vst [vmem:[%s172 + $0x8] sm:$0xff] %v343
      %376 = vst [vmem:[%s172 + $0x10] sm:$0xff] %v344
      %377 = vst [vmem:[%s172 + $0x18] sm:$0xff] %v345
      %378 = vst [vmem:[%s172 + $0x20] sm:$0xff] %v346
      %379 = vst [vmem:[%s172 + $0x28] sm:$0xff] %v347
      %380 = vst [vmem:[%s172 + $0x30] sm:$0xff] %v348
      %381 = vst [vmem:[%s172 + $0x38] sm:$0xff] %v349
      %382 = vst [vmem:[%s172 + $0x40] sm:$0xff] %v350
      %383 = vst [vmem:[%s172 + $0x48] sm:$0xff] %v351
      %384 = vst [vmem:[%s172 + $0x50] sm:$0xff] %v352
      %385 = vst [vmem:[%s172 + $0x58] sm:$0xff] %v353
      %386 = vst [vmem:[%s172 + $0x60] sm:$0xff] %v354
      %387 = vst [vmem:[%s172 + $0x68] sm:$0xff] %v355
      %388 = vst [vmem:[%s172 + $0x70] sm:$0xff] %v356
      %389 = vst [vmem:[%s172 + $0x78] sm:$0xff] %v357
      %390 = vst [vmem:[%s172 + $0x80] sm:$0xff] %v358
      %391 = vst [vmem:[%s172 + $0x88] sm:$0xff] %v359
      %392 = vst [vmem:[%s172 + $0x90] sm:$0xff] %v360
      %393 = vst [vmem:[%s172 + $0x98] sm:$0xff] %v361
      %394 = vst [vmem:[%s172 + $0xa0] sm:$0xff] %v362
      %395 = vst [vmem:[%s172 + $0xa8] sm:$0xff] %v363
      %396 = vst [vmem:[%s172 + $0xb0] sm:$0xff] %v364
      %397 = vst [vmem:[%s172 + $0xb8] sm:$0xff] %v365
      %398 = vst [vmem:[%s172 + $0xc0] sm:$0xff] %v366
      %399 = vst [vmem:[%s172 + $0xc8] sm:$0xff] %v367
      %400 = vst [vmem:[%s172 + $0xd0] sm:$0xff] %v368
      %401 = vst [vmem:[%s172 + $0xd8] sm:$0xff] %v369
      %402 = vst [vmem:[%s172 + $0xe0] sm:$0xff] %v370
      %403 = vst [vmem:[%s172 + $0xe8] sm:$0xff] %v371
      %404 = vst [vmem:[%s172 + $0xf0] sm:$0xff] %v372
      %405 = vst [vmem:[%s172 + $0xf8] sm:$0xff] %v373
      %s406 = smul.u32 32, %s14
      %p407 = scmp.lt.s32.totalorder %s406, 63
      %s408 = scalar_select %p407, %s406, 63
      %s409 = smul.addr %s408, 8
      %s410 = scalar_lea.vmem %s3, %s409
      // Predicated region
      $region33: #{down_block_forward.5} parent=31 // pred_check
        %p411 = pneg %p100
      $region34: #{down_block_forward.5} parent=31 // pred_check_branch
        %413 = sbr.rel (%p411) target = $region36
      $region35: #{down_block_forward.5} parent=31 // pred_region
        %s414 = smul.u32 32, %s14
      $region36: #{down_block_forward.5} parent=31 // pred_fallthru
        _
    $region32: #{down_block_forward.5} parent=5 // pred_fallthru
      _
    %p415 = scmp.le.s32.totalorder 2, %s9
    // Predicated region
    $region37: #{down_block_forward.5} parent=5 // pred_check
      %p416 = pneg %p415
    $region38: #{down_block_forward.5} parent=5 // pred_check_branch
      %418 = sbr.rel (%p416) target = $region40
    $region39: #{down_block_forward.5} parent=5 // pred_region
      %s419 = ssub.s32 %s9, 2
      // Predicated region
      $region41: #{down_block_forward.5} parent=39 // pred_check
        %p420 = pneg %p106
      $region42: #{down_block_forward.5} parent=39 // pred_check_branch
        %422 = sbr.rel (%p420) target = $region44
      $region43: #{down_block_forward.5} parent=39 // pred_region
        %s423 = smul.u32 32, %s15
        %p424 = scmp.lt.s32.totalorder %s423, 63
        %s425 = scalar_select %p424, %s423, 63
        %s426 = smul.addr %s425, 8
        %s427 = scalar_lea.vmem %s3, %s426
      $region44: #{down_block_forward.5} parent=39 // pred_fallthru
        _
    $region40: #{down_block_forward.5} parent=5 // pred_fallthru
      _
  $region6: #{down_block_forward.5} parent=0 // loop_footer
    %s13 = sadd.s32 1, %s9
  $region7: #{down_block_forward.5} parent=0 // loop_footer_branch
    %8 = sbr.rel target = $region3
  $region8: #{down_block_forward.5} parent=0 // loop_exit
    _

// kernel: down_block_forward.4
$region0: #{down_block_forward.4}
  #allocation0 [shape = 'u32[]', space=smem, size = 0x4, offset = 0x4, fixed_abs, tag = 'smem constant byte address 0x4 - core index']
  #allocation1 [shape = 'u32[72,128]{1,0:T(1,128)}', space=vmem, size = 0x9000, scoped, tag = 'internal scratch']
  %s0 = inlined_call_operand.vmem [shape: bf16[512,128], index: 0, kind: input, shape index: {}]
  %s1 = inlined_call_operand.vmem [shape: bf16[128,128], index: 1, kind: input, shape index: {}]
  %s2 = inlined_call_operand.vmem [shape: f32[512,128], index: 2, kind: output, shape index: {0}]
  %s3 = inlined_call_operand.vmem [shape: f32[16,128], index: 3, kind: output, shape index: {1}]
  %s4 = inlined_call_operand.vmem [shape: f32[16,128], index: 4, kind: output, shape index: {2}]
  %5 = xla_tuple %s2, %s3, %s4
  %s6 = sld [smem:[#allocation0]]
  $region57: #{down_block_forward.4} parent=0
    _
  %s8 = ssub.s32 1, %s6
  %s9 = scalar_select 0, %s8, %s6
  loop: start=0, step=1, limit=4
  $region2: #{down_block_forward.4} parent=0 // loop_pre_header
    _
  $region3: #{down_block_forward.4} parent=0 // loop_header
    %s11 = sphi 0, %s15
    %p12 = scmp.ge.s32.totalorder %s11, 4
    %s21 = sphi 0, %s23
    %s24 = sphi 0, %s21
    %s25 = sphi 0, %s24
    %s41 = sphi 0, %s25
    %s45 = sphi 0, %s45
    %s47 = sphi 0, %s45
    %s48 = sphi 0, %s47
    %s62 = sphi 0, %s48
    %s68 = sphi 0, %s70
    %s71 = sphi 0, %s68
    %s72 = sphi 0, %s71
    %s88 = sphi 0, %s72
    %s94 = sphi 0, %s96
    %s97 = sphi 0, %s94
    %s98 = sphi 0, %s97
    %s114 = sphi 0, %s98
    %s120 = sphi 0, %s122
    %s123 = sphi 0, %s120
    %s124 = sphi 0, %s123
    %s140 = sphi 0, %s124
  $region4: #{down_block_forward.4} parent=0 // loop_header_branch
    %14 = sbr.rel (%p12) target = $region8
  $region5: #{down_block_forward.4} parent=0 // loop_body
    %s16 = ssub.s32 %s11, 1
    %s17 = ssub.s32 %s11, 2
    %s18 = sadd.s32 %s11, 1
    %s19 = ssub.s32 %s11, %s18
    %p20 = scmp.eq.s32.totalorder %s19, 0
    %s22 = sadd.s32 %s21, 1
    %s23 = scalar_select %p20, %s21, %s22
    %p26 = pneg %p20
    %p27 = scmp.eq.s32.totalorder %s11, 1
    %p28 = por %p26, %p27
    %p29 = scmp.ne.s32.totalorder %s21, %s24
    %p30 = scmp.eq.s32.totalorder %s11, 0
    %p31 = por %p29, %p30
    %p32 = scmp.ne.s32.totalorder %s21, %s24
    %p33 = scmp.eq.s32.totalorder %s16, 1
    %p34 = por %p32, %p33
    %p35 = scmp.ne.s32.totalorder %s24, %s25
    %p36 = scmp.eq.s32.totalorder %s16, 0
    %p37 = por %p35, %p36
    %p38 = scmp.ne.s32.totalorder %s24, %s25
    %p39 = scmp.eq.s32.totalorder %s17, 1
    %p40 = por %p38, %p39
    %p42 = scmp.ne.s32.totalorder %s25, %s41
    %p43 = scmp.eq.s32.totalorder %s17, 0
    %p44 = por %p42, %p43
    %s46 = sadd.s32 %s45, 1
    %p49 = scmp.eq.s32.totalorder %s11, 1
    %p50 = scmp.ne.s32.totalorder %s45, %s47
    %p51 = scmp.eq.s32.totalorder %s11, 0
    %p52 = por %p50, %p51
    %p53 = scmp.ne.s32.totalorder %s45, %s47
    %p54 = scmp.eq.s32.totalorder %s16, 1
    %p55 = por %p53, %p54
    %p56 = scmp.ne.s32.totalorder %s47, %s48
    %p57 = scmp.eq.s32.totalorder %s16, 0
    %p58 = por %p56, %p57
    %p59 = scmp.ne.s32.totalorder %s47, %s48
    %p60 = scmp.eq.s32.totalorder %s17, 1
    %p61 = por %p59, %p60
    %p63 = scmp.ne.s32.totalorder %s48, %s62
    %p64 = scmp.eq.s32.totalorder %s17, 0
    %p65 = por %p63, %p64
    %s66 = ssub.s32 %s11, %s18
    %p67 = scmp.eq.s32.totalorder %s66, 0
    %s69 = sadd.s32 %s68, 1
    %s70 = scalar_select %p67, %s68, %s69
    %p73 = pneg %p67
    %p74 = scmp.eq.s32.totalorder %s11, 1
    %p75 = por %p73, %p74
    %p76 = scmp.ne.s32.totalorder %s68, %s71
    %p77 = scmp.eq.s32.totalorder %s11, 0
    %p78 = por %p76, %p77
    %p79 = scmp.ne.s32.totalorder %s68, %s71
    %p80 = scmp.eq.s32.totalorder %s16, 1
    %p81 = por %p79, %p80
    %p82 = scmp.ne.s32.totalorder %s71, %s72
    %p83 = scmp.eq.s32.totalorder %s16, 0
    %p84 = por %p82, %p83
    %p85 = scmp.ne.s32.totalorder %s71, %s72
    %p86 = scmp.eq.s32.totalorder %s17, 1
    %p87 = por %p85, %p86
    %p89 = scmp.ne.s32.totalorder %s72, %s88
    %p90 = scmp.eq.s32.totalorder %s17, 0
    %p91 = por %p89, %p90
    %s92 = ssub.s32 %s11, %s18
    %p93 = scmp.eq.s32.totalorder %s92, 0
    %s95 = sadd.s32 %s94, 1
    %s96 = scalar_select %p93, %s94, %s95
    %p99 = pneg %p93
    %p100 = scmp.eq.s32.totalorder %s11, 1
    %p101 = por %p99, %p100
    %p102 = scmp.ne.s32.totalorder %s94, %s97
    %p103 = scmp.eq.s32.totalorder %s11, 0
    %p104 = por %p102, %p103
    %p105 = scmp.ne.s32.totalorder %s94, %s97
    %p106 = scmp.eq.s32.totalorder %s16, 1
    %p107 = por %p105, %p106
    %p108 = scmp.ne.s32.totalorder %s97, %s98
    %p109 = scmp.eq.s32.totalorder %s16, 0
    %p110 = por %p108, %p109
    %p111 = scmp.ne.s32.totalorder %s97, %s98
    %p112 = scmp.eq.s32.totalorder %s17, 1
    %p113 = por %p111, %p112
    %p115 = scmp.ne.s32.totalorder %s98, %s114
    %p116 = scmp.eq.s32.totalorder %s17, 0
    %p117 = por %p115, %p116
    %s118 = ssub.s32 %s11, %s18
    %p119 = scmp.eq.s32.totalorder %s118, 0
    %s121 = sadd.s32 %s120, 1
    %s122 = scalar_select %p119, %s120, %s121
    %p125 = pneg %p119
    %p126 = scmp.eq.s32.totalorder %s11, 1
    %p127 = por %p125, %p126
    %p128 = scmp.ne.s32.totalorder %s120, %s123
    %p129 = scmp.eq.s32.totalorder %s11, 0
    %p130 = por %p128, %p129
    %p131 = scmp.ne.s32.totalorder %s120, %s123
    %p132 = scmp.eq.s32.totalorder %s16, 1
    %p133 = por %p131, %p132
    %p134 = scmp.ne.s32.totalorder %s123, %s124
    %p135 = scmp.eq.s32.totalorder %s16, 0
    %p136 = por %p134, %p135
    %p137 = scmp.ne.s32.totalorder %s123, %s124
    %p138 = scmp.eq.s32.totalorder %s17, 1
    %p139 = por %p137, %p138
    %p141 = scmp.ne.s32.totalorder %s124, %s140
    %p142 = scmp.eq.s32.totalorder %s17, 0
    %p143 = por %p141, %p142
    %p144 = scmp.le.s32.totalorder 1, %s11
    %p145 = scmp.lt.s32.totalorder %s11, 3
    %p146 = pnand %p144, %p145
    %p147 = pneg %p146
    // Predicated region
    $region9: #{down_block_forward.4} parent=5 // pred_check
      _
    $region10: #{down_block_forward.4} parent=5 // pred_check_branch
      %149 = sbr.rel (%p146) target = $region12
    $region11: #{down_block_forward.4} parent=5 // pred_region
      %s150 = ssub.s32 %s11, 1
      // Predicated region
      $region13: #{down_block_forward.4} parent=11 // pred_check
        %p151 = pneg %p58
      $region14: #{down_block_forward.4} parent=11 // pred_check_branch
        %153 = sbr.rel (%p151) target = $region16
      $region15: #{down_block_forward.4} parent=11 // pred_region
        _
      $region16: #{down_block_forward.4} parent=11 // pred_fallthru
        _
    $region12: #{down_block_forward.4} parent=5 // pred_fallthru
      _
    %p154 = scmp.lt.s32.totalorder %s11, 2
    // Predicated region
    $region17: #{down_block_forward.4} parent=5 // pred_check
      %p155 = pneg %p154
    $region18: #{down_block_forward.4} parent=5 // pred_check_branch
      %157 = sbr.rel (%p155) target = $region20
    $region19: #{down_block_forward.4} parent=5 // pred_region
      // Predicated region
      $region21: #{down_block_forward.4} parent=19 // pred_check
        %p158 = pneg %p31
      $region22: #{down_block_forward.4} parent=19 // pred_check_branch
        %160 = sbr.rel (%p158) target = $region24
      $region23: #{down_block_forward.4} parent=19 // pred_region
        %s161 = smul.u32 32, %s11
        %p162 = scmp.lt.s32.totalorder %s161, 63
        %s163 = scalar_select %p162, %s161, 63
        %s164 = smul.addr %s163, 4
        %s165 = scalar_lea.vmem %s0, %s164
        %s166 = smul.u32 32, %s11
      $region24: #{down_block_forward.4} parent=19 // pred_fallthru
        _
    $region20: #{down_block_forward.4} parent=5 // pred_fallthru
      _
    %p167 = scmp.le.s32.totalorder 1, %s11
    %p168 = scmp.lt.s32.totalorder %s11, 3
    %p169 = pnand %p167, %p168
    %p170 = pneg %p169
    // Predicated region
    $region25: #{down_block_forward.4} parent=5 // pred_check
      _
    $region26: #{down_block_forward.4} parent=5 // pred_check_branch
      %172 = sbr.rel (%p169) target = $region28
    $region27: #{down_block_forward.4} parent=5 // pred_region
      %s173 = ssub.s32 %s11, 1
      %s174 = smul.u32 32, %s16
      %p175 = scmp.lt.s32.totalorder %s174, 63
      %s176 = scalar_select %p175, %s174, 63
      %s177 = smul.addr %s176, 4
      %s178 = scalar_lea.vmem %s0, %s177
      %p179 = pneg %p37
      %p180 = pneg %p34
      %p181 = pneg %p58
      %p182 = pneg %p55
      %p183 = pneg %p84
      %p184 = pneg %p81
      %s185 = smul.u32 32, %s16
      %p186 = scmp.lt.s32.totalorder %s185, 63
      %s187 = scalar_select %p186, %s185, 63
      %s188 = smul.addr %s187, 8
      %s189 = scalar_lea.vmem %s2, %s188
      %p190 = pneg %p110
      %p191 = pneg %p107
      %p192 = scmp.lt.s32.totalorder %s16, 1
      %s193 = scalar_select %p192, %s16, 1
      %s194 = smul.addr %s193, 8
      %s195 = scalar_lea.vmem %s3, %s194
      %p196 = pneg %p136
      %p197 = pneg %p133
      %p198 = scmp.lt.s32.totalorder %s16, 1
      %s199 = scalar_select %p198, %s16, 1
      %s200 = smul.addr %s199, 8
      %s201 = scalar_lea.vmem %s4, %s200
      %s202 = smul.u32 32, %s16
      %p203 = scmp.lt.s32.totalorder %s202, 63
      %s204 = scalar_select %p203, %s202, 63
      %s205 = smul.addr %s204, 4
      %s206 = scalar_lea.vmem %s0, %s205
      %s207 = smul.u32 32, %s16
      %s208 = smul.u32 32, %s16
      %p209 = scmp.lt.s32.totalorder %s208, 63
      %s210 = scalar_select %p209, %s208, 63
      %s211 = smul.addr %s210, 8
      %s212 = scalar_lea.vmem %s2, %s211
      %s213 = smul.u32 32, %s16
      %p214 = scmp.lt.s32.totalorder %s16, 1
      %s215 = scalar_select %p214, %s16, 1
      %s216 = smul.addr %s215, 8
      %s217 = scalar_lea.vmem %s3, %s216
      %p218 = scmp.lt.s32.totalorder %s16, 1
      %s219 = scalar_select %p218, %s16, 1
      %s220 = smul.addr %s219, 8
      %s221 = scalar_lea.vmem %s4, %s220
      %v222 = vld [vmem:[%s206] sm:$0xf]
      %v223 = vld [vmem:[%s206 + $0x4] sm:$0xf]
      %v224 = vld [vmem:[%s206 + $0x8] sm:$0xf]
      %v225 = vld [vmem:[%s206 + $0xc] sm:$0xf]
      %v226 = vld [vmem:[%s206 + $0x10] sm:$0xf]
      %v227 = vld [vmem:[%s206 + $0x14] sm:$0xf]
      %v228 = vld [vmem:[%s206 + $0x18] sm:$0xf]
      %v229 = vld [vmem:[%s206 + $0x1c] sm:$0xf]
      %v230 = vld [vmem:[%s206 + $0x20] sm:$0xf]
      %v231 = vld [vmem:[%s206 + $0x24] sm:$0xf]
      %v232 = vld [vmem:[%s206 + $0x28] sm:$0xf]
      %v233 = vld [vmem:[%s206 + $0x2c] sm:$0xf]
      %v234 = vld [vmem:[%s206 + $0x30] sm:$0xf]
      %v235 = vld [vmem:[%s206 + $0x34] sm:$0xf]
      %v236 = vld [vmem:[%s206 + $0x38] sm:$0xf]
      %v237 = vld [vmem:[%s206 + $0x3c] sm:$0xf]
      %v238 = vld [vmem:[%s206 + $0x40] sm:$0xf]
      %v239 = vld [vmem:[%s206 + $0x44] sm:$0xf]
      %v240 = vld [vmem:[%s206 + $0x48] sm:$0xf]
      %v241 = vld [vmem:[%s206 + $0x4c] sm:$0xf]
      %v242 = vld [vmem:[%s206 + $0x50] sm:$0xf]
      %v243 = vld [vmem:[%s206 + $0x54] sm:$0xf]
      %v244 = vld [vmem:[%s206 + $0x58] sm:$0xf]
      %v245 = vld [vmem:[%s206 + $0x5c] sm:$0xf]
      %v246 = vld [vmem:[%s206 + $0x60] sm:$0xf]
      %v247 = vld [vmem:[%s206 + $0x64] sm:$0xf]
      %v248 = vld [vmem:[%s206 + $0x68] sm:$0xf]
      %v249 = vld [vmem:[%s206 + $0x6c] sm:$0xf]
      %v250 = vld [vmem:[%s206 + $0x70] sm:$0xf]
      %v251 = vld [vmem:[%s206 + $0x74] sm:$0xf]
      %v252 = vld [vmem:[%s206 + $0x78] sm:$0xf]
      %v253 = vld [vmem:[%s206 + $0x7c] sm:$0xf]
      %v254 = vld [vmem:[%s1] sm:$0xf]
      %v255 = vld [vmem:[%s1 + $0x4] sm:$0xf]
      %v256 = vld [vmem:[%s1 + $0x8] sm:$0xf]
      %v257 = vld [vmem:[%s1 + $0xc] sm:$0xf]
      %v258 = vld [vmem:[%s1 + $0x10] sm:$0xf]
      %v259 = vld [vmem:[%s1 + $0x14] sm:$0xf]
      %v260 = vld [vmem:[%s1 + $0x18] sm:$0xf]
      %v261 = vld [vmem:[%s1 + $0x1c] sm:$0xf]
      %v262 = vld [vmem:[%s1 + $0x20] sm:$0xf]
      %v263 = vld [vmem:[%s1 + $0x24] sm:$0xf]
      %v264 = vld [vmem:[%s1 + $0x28] sm:$0xf]
      %v265 = vld [vmem:[%s1 + $0x2c] sm:$0xf]
      %v266 = vld [vmem:[%s1 + $0x30] sm:$0xf]
      %v267 = vld [vmem:[%s1 + $0x34] sm:$0xf]
      %v268 = vld [vmem:[%s1 + $0x38] sm:$0xf]
      %v269 = vld [vmem:[%s1 + $0x3c] sm:$0xf]
      %v302 = vunpack.c.l.b16 %v222
      %v303 = vunpack.c.l.b16 %v223
      %v304 = vunpack.c.l.b16 %v224
      %v305 = vunpack.c.l.b16 %v225
      %v306 = vunpack.c.l.b16 %v226
      %v307 = vunpack.c.l.b16 %v227
      %v308 = vunpack.c.l.b16 %v228
      %v309 = vunpack.c.l.b16 %v229
      %v310 = vunpack.c.l.b16 %v230
      %v311 = vunpack.c.l.b16 %v231
      %v312 = vunpack.c.l.b16 %v232
      %v313 = vunpack.c.l.b16 %v233
      %v314 = vunpack.c.l.b16 %v234
      %v315 = vunpack.c.l.b16 %v235
      %v316 = vunpack.c.l.b16 %v236
      %v317 = vunpack.c.l.b16 %v237
      %v318 = vunpack.c.l.b16 %v238
      %v319 = vunpack.c.l.b16 %v239
      %v320 = vunpack.c.l.b16 %v240
      %v321 = vunpack.c.l.b16 %v241
      %v322 = vunpack.c.l.b16 %v242
      %v323 = vunpack.c.l.b16 %v243
      %v324 = vunpack.c.l.b16 %v244
      %v325 = vunpack.c.l.b16 %v245
      %v326 = vunpack.c.l.b16 %v246
      %v327 = vunpack.c.l.b16 %v247
      %v328 = vunpack.c.l.b16 %v248
      %v329 = vunpack.c.l.b16 %v249
      %v330 = vunpack.c.l.b16 %v250
      %v331 = vunpack.c.l.b16 %v251
      %v332 = vunpack.c.l.b16 %v252
      %v333 = vunpack.c.l.b16 %v253
      %v334 = vpack.c.b16 %v303, %v302
      %v335 = vpack.c.b16 %v305, %v304
      %v336 = vpack.c.b16 %v307, %v306
      %v337 = vpack.c.b16 %v309, %v308
      %v338 = vpack.c.b16 %v311, %v310
      %v339 = vpack.c.b16 %v313, %v312
      %v340 = vpack.c.b16 %v315, %v314
      %v341 = vpack.c.b16 %v317, %v316
      %v342 = vpack.c.b16 %v319, %v318
      %v343 = vpack.c.b16 %v321, %v320
      %v344 = vpack.c.b16 %v323, %v322
      %v345 = vpack.c.b16 %v325, %v324
      %v346 = vpack.c.b16 %v327, %v326
      %v347 = vpack.c.b16 %v329, %v328
      %v348 = vpack.c.b16 %v331, %v330
      %v349 = vpack.c.b16 %v333, %v332
      %v382 = vunpack.c.l.b16 %v254
      %v383 = vunpack.c.l.b16 %v255
      %v384 = vunpack.c.l.b16 %v256
      %v385 = vunpack.c.l.b16 %v257
      %v386 = vunpack.c.l.b16 %v258
      %v387 = vunpack.c.l.b16 %v259
      %v388 = vunpack.c.l.b16 %v260
      %v389 = vunpack.c.l.b16 %v261
      %v390 = vunpack.c.l.b16 %v262
      %v391 = vunpack.c.l.b16 %v263
      %v392 = vunpack.c.l.b16 %v264
      %v393 = vunpack.c.l.b16 %v265
      %v394 = vunpack.c.l.b16 %v266
      %v395 = vunpack.c.l.b16 %v267
      %v396 = vunpack.c.l.b16 %v268
      %v397 = vunpack.c.l.b16 %v269
      %v398 = vpack.c.b16 %v383, %v382
      %v399 = vpack.c.b16 %v385, %v384
      %v400 = vpack.c.b16 %v387, %v386
      %v401 = vpack.c.b16 %v389, %v388
      %v402 = vpack.c.b16 %v391, %v390
      %v403 = vpack.c.b16 %v393, %v392
      %v404 = vpack.c.b16 %v395, %v394
      %v405 = vpack.c.b16 %v397, %v396
      %414 = vmatpush.bf16.msra.mxu0 %v405
      %415 = vmatpush.bf16.msra.mxu0 %v404
      %416 = vmatpush.bf16.msra.mxu0 %v403
      %417 = vmatpush.bf16.msra.mxu0 %v402
      %418 = vmatpush.bf16.msra.mxu0 %v401
      %419 = vmatpush.bf16.msra.mxu0 %v400
      %420 = vmatpush.bf16.msra.mxu0 %v399
      %421 = vmatpush.bf16.msra.mxu0 %v398
      %422 = vmatmul.bf16.gmra.mxu0 %v334
      %v423 = vpop.f32.mrf.mxu0
      %v424 = vadd.f32 0.0, %v423
      %v425 = vpop.f32.mrf.mxu0
      %v426 = vadd.f32 0.0, %v425
      %427 = vmatmul.bf16.gmra.mxu0 %v335
      %v428 = vpop.f32.mrf.mxu0
      %v429 = vadd.f32 0.0, %v428
      %v430 = vpop.f32.mrf.mxu0
      %v431 = vadd.f32 0.0, %v430
      %432 = vmatmul.bf16.gmra.mxu0 %v336
      %v433 = vpop.f32.mrf.mxu0
      %v434 = vadd.f32 0.0, %v433
      %v435 = vpop.f32.mrf.mxu0
      %v436 = vadd.f32 0.0, %v435
      %437 = vmatmul.bf16.gmra.mxu0 %v337
      %v438 = vpop.f32.mrf.mxu0
      %v439 = vadd.f32 0.0, %v438
      %v440 = vpop.f32.mrf.mxu0
      %v441 = vadd.f32 0.0, %v440
      %442 = vmatmul.bf16.gmra.mxu0 %v338
      %v443 = vpop.f32.mrf.mxu0
      %v444 = vadd.f32 0.0, %v443
      %v445 = vpop.f32.mrf.mxu0
      %v446 = vadd.f32 0.0, %v445
      %447 = vmatmul.bf16.gmra.mxu0 %v339
      %v448 = vpop.f32.mrf.mxu0
      %v449 = vadd.f32 0.0, %v448
      %v450 = vpop.f32.mrf.mxu0
      %v451 = vadd.f32 0.0, %v450
      %452 = vmatmul.bf16.gmra.mxu0 %v340
      %v453 = vpop.f32.mrf.mxu0
      %v454 = vadd.f32 0.0, %v453
      %v455 = vpop.f32.mrf.mxu0
      %v456 = vadd.f32 0.0, %v455
      %457 = vmatmul.bf16.gmra.mxu0 %v341
      %v458 = vpop.f32.mrf.mxu0
      %v459 = vadd.f32 0.0, %v458
      %v460 = vpop.f32.mrf.mxu0
      %v461 = vadd.f32 0.0, %v460
      %462 = vmatmul.bf16.gmra.mxu0 %v342
      %v463 = vpop.f32.mrf.mxu0
      %v464 = vadd.f32 0.0, %v463
      %v465 = vpop.f32.mrf.mxu0
      %v466 = vadd.f32 0.0, %v465
      %467 = vmatmul.bf16.gmra.mxu0 %v343
      %v468 = vpop.f32.mrf.mxu0
      %v469 = vadd.f32 0.0, %v468
      %v470 = vpop.f32.mrf.mxu0
      %v471 = vadd.f32 0.0, %v470
      %472 = vmatmul.bf16.gmra.mxu0 %v344
      %v473 = vpop.f32.mrf.mxu0
      %v474 = vadd.f32 0.0, %v473
      %v475 = vpop.f32.mrf.mxu0
      %v476 = vadd.f32 0.0, %v475
      %477 = vmatmul.bf16.gmra.mxu0 %v345
      %v478 = vpop.f32.mrf.mxu0
      %v479 = vadd.f32 0.0, %v478
      %v480 = vpop.f32.mrf.mxu0
      %v481 = vadd.f32 0.0, %v480
      %482 = vmatmul.bf16.gmra.mxu0 %v346
      %v483 = vpop.f32.mrf.mxu0
      %v484 = vadd.f32 0.0, %v483
      %v485 = vpop.f32.mrf.mxu0
      %v486 = vadd.f32 0.0, %v485
      %487 = vmatmul.bf16.gmra.mxu0 %v347
      %v488 = vpop.f32.mrf.mxu0
      %v489 = vadd.f32 0.0, %v488
      %v490 = vpop.f32.mrf.mxu0
      %v491 = vadd.f32 0.0, %v490
      %492 = vmatmul.bf16.gmra.mxu0 %v348
      %v493 = vpop.f32.mrf.mxu0
      %v494 = vadd.f32 0.0, %v493
      %v495 = vpop.f32.mrf.mxu0
      %v496 = vadd.f32 0.0, %v495
      %497 = vmatmul.bf16.gmra.mxu0 %v349
      %v498 = vpop.f32.mrf.mxu0
      %v499 = vadd.f32 0.0, %v498
      %v500 = vpop.f32.mrf.mxu0
      %v501 = vadd.f32 0.0, %v500
      %502 = vdwg.mxu0
      %503 = vst [vmem:[%s212] sm:$0xff] %v424
      %504 = vst [vmem:[%s212 + $0x8] sm:$0xff] %v426
      %505 = vst [vmem:[%s212 + $0x10] sm:$0xff] %v429
      %506 = vst [vmem:[%s212 + $0x18] sm:$0xff] %v431
      %507 = vst [vmem:[%s212 + $0x20] sm:$0xff] %v434
      %508 = vst [vmem:[%s212 + $0x28] sm:$0xff] %v436
      %509 = vst [vmem:[%s212 + $0x30] sm:$0xff] %v439
      %510 = vst [vmem:[%s212 + $0x38] sm:$0xff] %v441
      %511 = vst [vmem:[%s212 + $0x40] sm:$0xff] %v444
      %512 = vst [vmem:[%s212 + $0x48] sm:$0xff] %v446
      %513 = vst [vmem:[%s212 + $0x50] sm:$0xff] %v449
      %514 = vst [vmem:[%s212 + $0x58] sm:$0xff] %v451
      %515 = vst [vmem:[%s212 + $0x60] sm:$0xff] %v454
      %516 = vst [vmem:[%s212 + $0x68] sm:$0xff] %v456
      %517 = vst [vmem:[%s212 + $0x70] sm:$0xff] %v459
      %518 = vst [vmem:[%s212 + $0x78] sm:$0xff] %v461
      %519 = vst [vmem:[%s212 + $0x80] sm:$0xff] %v464
      %520 = vst [vmem:[%s212 + $0x88] sm:$0xff] %v466
      %521 = vst [vmem:[%s212 + $0x90] sm:$0xff] %v469
      %522 = vst [vmem:[%s212 + $0x98] sm:$0xff] %v471
      %523 = vst [vmem:[%s212 + $0xa0] sm:$0xff] %v474
      %524 = vst [vmem:[%s212 + $0xa8] sm:$0xff] %v476
      %525 = vst [vmem:[%s212 + $0xb0] sm:$0xff] %v479
      %526 = vst [vmem:[%s212 + $0xb8] sm:$0xff] %v481
      %527 = vst [vmem:[%s212 + $0xc0] sm:$0xff] %v484
      %528 = vst [vmem:[%s212 + $0xc8] sm:$0xff] %v486
      %529 = vst [vmem:[%s212 + $0xd0] sm:$0xff] %v489
      %530 = vst [vmem:[%s212 + $0xd8] sm:$0xff] %v491
      %531 = vst [vmem:[%s212 + $0xe0] sm:$0xff] %v494
      %532 = vst [vmem:[%s212 + $0xe8] sm:$0xff] %v496
      %533 = vst [vmem:[%s212 + $0xf0] sm:$0xff] %v499
      %534 = vst [vmem:[%s212 + $0xf8] sm:$0xff] %v501
      %v535 = vadd.f32 %v424, %v426
      %v536 = vadd.f32 %v535, %v429
      %v537 = vadd.f32 %v536, %v431
      %v538 = vadd.f32 %v537, %v434
      %v539 = vadd.f32 %v538, %v436
      %v540 = vadd.f32 %v539, %v439
      %v541 = vadd.f32 %v540, %v441
      %v542 = vadd.f32 %v541, %v444
      %v543 = vadd.f32 %v542, %v446
      %v544 = vadd.f32 %v543, %v449
      %v545 = vadd.f32 %v544, %v451
      %v546 = vadd.f32 %v545, %v454
      %v547 = vadd.f32 %v546, %v456
      %v548 = vadd.f32 %v547, %v459
      %v549 = vadd.f32 %v548, %v461
      %v550 = vadd.f32 %v549, %v464
      %v551 = vadd.f32 %v550, %v466
      %v552 = vadd.f32 %v551, %v469
      %v553 = vadd.f32 %v552, %v471
      %v554 = vadd.f32 %v553, %v474
      %v555 = vadd.f32 %v554, %v476
      %v556 = vadd.f32 %v555, %v479
      %v557 = vadd.f32 %v556, %v481
      %v558 = vadd.f32 %v557, %v484
      %v559 = vadd.f32 %v558, %v486
      %v560 = vadd.f32 %v559, %v489
      %v561 = vadd.f32 %v560, %v491
      %v562 = vadd.f32 %v561, %v494
      %v563 = vadd.f32 %v562, %v496
      %v564 = vadd.f32 %v563, %v499
      %v565 = vadd.f32 %v564, %v501
      %v566 = vrot.slane %v565, 4
      %v567 = vadd.f32 %v565, %v566
      %v568 = vrot.slane %v567, 2
      %v569 = vadd.f32 %v567, %v568
      %v570 = vrot.slane %v569, 1
      %v571 = vadd.f32 %v569, %v570
      %v572 = vmul.f32 %v424, %v424
      %v573 = vmul.f32 %v426, %v426
      %v574 = vmul.f32 %v429, %v429
      %v575 = vmul.f32 %v431, %v431
      %v576 = vmul.f32 %v434, %v434
      %v577 = vmul.f32 %v436, %v436
      %v578 = vmul.f32 %v439, %v439
      %v579 = vmul.f32 %v441, %v441
      %v580 = vmul.f32 %v444, %v444
      %v581 = vmul.f32 %v446, %v446
      %v582 = vmul.f32 %v449, %v449
      %v583 = vmul.f32 %v451, %v451
      %v584 = vmul.f32 %v454, %v454
      %v585 = vmul.f32 %v456, %v456
      %v586 = vmul.f32 %v459, %v459
      %v587 = vmul.f32 %v461, %v461
      %v588 = vmul.f32 %v464, %v464
      %v589 = vmul.f32 %v466, %v466
      %v590 = vmul.f32 %v469, %v469
      %v591 = vmul.f32 %v471, %v471
      %v592 = vmul.f32 %v474, %v474
      %v593 = vmul.f32 %v476, %v476
      %v594 = vmul.f32 %v479, %v479
      %v595 = vmul.f32 %v481, %v481
      %v596 = vmul.f32 %v484, %v484
      %v597 = vmul.f32 %v486, %v486
      %v598 = vmul.f32 %v489, %v489
      %v599 = vmul.f32 %v491, %v491
      %v600 = vmul.f32 %v494, %v494
      %v601 = vmul.f32 %v496, %v496
      %v602 = vmul.f32 %v499, %v499
      %v603 = vmul.f32 %v501, %v501
      %v604 = vadd.f32 %v572, %v573
      %v605 = vadd.f32 %v604, %v574
      %v606 = vadd.f32 %v605, %v575
      %v607 = vadd.f32 %v606, %v576
      %v608 = vadd.f32 %v607, %v577
      %v609 = vadd.f32 %v608, %v578
      %v610 = vadd.f32 %v609, %v579
      %v611 = vadd.f32 %v610, %v580
      %v612 = vadd.f32 %v611, %v581
      %v613 = vadd.f32 %v612, %v582
      %v614 = vadd.f32 %v613, %v583
      %v615 = vadd.f32 %v614, %v584
      %v616 = vadd.f32 %v615, %v585
      %v617 = vadd.f32 %v616, %v586
      %v618 = vadd.f32 %v617, %v587
      %v619 = vadd.f32 %v618, %v588
      %v620 = vadd.f32 %v619, %v589
      %v621 = vadd.f32 %v620, %v590
      %v622 = vadd.f32 %v621, %v591
      %v623 = vadd.f32 %v622, %v592
      %v624 = vadd.f32 %v623, %v593
      %v625 = vadd.f32 %v624, %v594
      %v626 = vadd.f32 %v625, %v595
      %v627 = vadd.f32 %v626, %v596
      %v628 = vadd.f32 %v627, %v597
      %v629 = vadd.f32 %v628, %v598
      %v630 = vadd.f32 %v629, %v599
      %v631 = vadd.f32 %v630, %v600
      %v632 = vadd.f32 %v631, %v601
      %v633 = vadd.f32 %v632, %v602
      %v634 = vadd.f32 %v633, %v603
      %v635 = vrot.slane %v634, 4
      %v636 = vadd.f32 %v634, %v635
      %v637 = vrot.slane %v636, 2
      %v638 = vadd.f32 %v636, %v637
      %v639 = vrot.slane %v638, 1
      %v640 = vadd.f32 %v638, %v639
      %641 = vst [vmem:[%s217] sm:$0xff] %v571
      %642 = vst [vmem:[%s221] sm:$0xff] %v640
      %s643 = smul.u32 32, %s16
      %p644 = scmp.lt.s32.totalorder %s643, 63
      %s645 = scalar_select %p644, %s643, 63
      %s646 = smul.addr %s645, 8
      %s647 = scalar_lea.vmem %s2, %s646
      %p648 = scmp.lt.s32.totalorder %s16, 1
      %s649 = scalar_select %p648, %s16, 1
      %s650 = smul.addr %s649, 8
      %s651 = scalar_lea.vmem %s3, %s650
      %p652 = scmp.lt.s32.totalorder %s16, 1
      %s653 = scalar_select %p652, %s16, 1
      %s654 = smul.addr %s653, 8
      %s655 = scalar_lea.vmem %s4, %s654
      // Predicated region
      $region29: #{down_block_forward.4} parent=27 // pred_check
        %p656 = pneg %p81
      $region30: #{down_block_forward.4} parent=27 // pred_check_branch
        %658 = sbr.rel (%p656) target = $region32
      $region31: #{down_block_forward.4} parent=27 // pred_region
        %s659 = smul.u32 32, %s16
      $region32: #{down_block_forward.4} parent=27 // pred_fallthru
        _
      // Predicated region
      $region33: #{down_block_forward.4} parent=27 // pred_check
        %p660 = pneg %p107
      $region34: #{down_block_forward.4} parent=27 // pred_check_branch
        %662 = sbr.rel (%p660) target = $region36
      $region35: #{down_block_forward.4} parent=27 // pred_region
        _
      $region36: #{down_block_forward.4} parent=27 // pred_fallthru
        _
      // Predicated region
      $region37: #{down_block_forward.4} parent=27 // pred_check
        %p663 = pneg %p133
      $region38: #{down_block_forward.4} parent=27 // pred_check_branch
        %665 = sbr.rel (%p663) target = $region40
      $region39: #{down_block_forward.4} parent=27 // pred_region
        _
      $region40: #{down_block_forward.4} parent=27 // pred_fallthru
        _
    $region28: #{down_block_forward.4} parent=5 // pred_fallthru
      _
    %p666 = scmp.le.s32.totalorder 2, %s11
    // Predicated region
    $region41: #{down_block_forward.4} parent=5 // pred_check
      %p667 = pneg %p666
    $region42: #{down_block_forward.4} parent=5 // pred_check_branch
      %669 = sbr.rel (%p667) target = $region44
    $region43: #{down_block_forward.4} parent=5 // pred_region
      %s670 = ssub.s32 %s11, 2
      // Predicated region
      $region45: #{down_block_forward.4} parent=43 // pred_check
        %p671 = pneg %p87
      $region46: #{down_block_forward.4} parent=43 // pred_check_branch
        %673 = sbr.rel (%p671) target = $region48
      $region47: #{down_block_forward.4} parent=43 // pred_region
        %s674 = smul.u32 32, %s17
        %p675 = scmp.lt.s32.totalorder %s674, 63
        %s676 = scalar_select %p675, %s674, 63
        %s677 = smul.addr %s676, 8
        %s678 = scalar_lea.vmem %s2, %s677
      $region48: #{down_block_forward.4} parent=43 // pred_fallthru
        _
      // Predicated region
      $region49: #{down_block_forward.4} parent=43 // pred_check
        %p679 = pneg %p113
      $region50: #{down_block_forward.4} parent=43 // pred_check_branch
        %681 = sbr.rel (%p679) target = $region52
      $region51: #{down_block_forward.4} parent=43 // pred_region
        %p682 = scmp.lt.s32.totalorder %s17, 1
        %s683 = scalar_select %p682, %s17, 1
        %s684 = smul.addr %s683, 8
        %s685 = scalar_lea.vmem %s3, %s684
      $region52: #{down_block_forward.4} parent=43 // pred_fallthru
        _
      // Predicated region
      $region53: #{down_block_forward.4} parent=43 // pred_check
        %p686 = pneg %p139
      $region54: #{down_block_forward.4} parent=43 // pred_check_branch
        %688 = sbr.rel (%p686) target = $region56
      $region55: #{down_block_forward.4} parent=43 // pred_region
        %p689 = scmp.lt.s32.totalorder %s17, 1
        %s690 = scalar_select %p689, %s17, 1
        %s691 = smul.addr %s690, 8
        %s692 = scalar_lea.vmem %s4, %s691
      $region56: #{down_block_forward.4} parent=43 // pred_fallthru
        _
    $region44: #{down_block_forward.4} parent=5 // pred_fallthru
      _
  $region6: #{down_block_forward.4} parent=0 // loop_footer
    %s15 = sadd.s32 1, %s11
  $region7: #{down_block_forward.4} parent=0 // loop_footer_branch
    %10 = sbr.rel target = $region3
  $region8: #{down_block_forward.4} parent=0 // loop_exit
    _

// kernel: down_block_forward.6
$region0: #{down_block_forward.6}
  #allocation0 [shape = 'u32[]', space=smem, size = 0x4, offset = 0x4, fixed_abs, tag = 'smem constant byte address 0x4 - core index']
  #allocation1 [shape = 'u32[72,128]{1,0:T(1,128)}', space=vmem, size = 0x9000, scoped, tag = 'internal scratch']
  %s0 = inlined_call_operand.vmem [shape: bf16[128,128], index: 0, kind: input, shape index: {}]
  %s1 = inlined_call_operand.vmem [shape: bf16[128,128], index: 1, kind: input, shape index: {}]
  %s2 = inlined_call_operand.vmem [shape: f32[128,128], index: 2, kind: output, shape index: {0}]
  %s3 = inlined_call_operand.vmem [shape: f32[8,128], index: 3, kind: output, shape index: {1}]
  %s4 = inlined_call_operand.vmem [shape: f32[8,128], index: 4, kind: output, shape index: {2}]
  %5 = xla_tuple %s2, %s3, %s4
  %s6 = sld [smem:[#allocation0]]
  $region34: #{down_block_forward.6} parent=0
    _
  %s8 = ssub.s32 1, %s6
  %s9 = scalar_select 0, %s8, %s6
  // Predicated region
  $region2: #{down_block_forward.6} parent=0 // pred_check
    _
  $region3: #{down_block_forward.6} parent=0 // pred_check_branch
    %11 = sbr.rel (0) target = $region5
  $region4: #{down_block_forward.6} parent=0 // pred_region
    _
  $region5: #{down_block_forward.6} parent=0 // pred_fallthru
    _
  // Predicated region
  $region6: #{down_block_forward.6} parent=0 // pred_check
    _
  $region7: #{down_block_forward.6} parent=0 // pred_check_branch
    %13 = sbr.rel (0) target = $region9
  $region8: #{down_block_forward.6} parent=0 // pred_region
    _
  $region9: #{down_block_forward.6} parent=0 // pred_fallthru
    _
  %v14 = vld [vmem:[%s0] sm:$0xf]
  %v15 = vld [vmem:[%s0 + $0x4] sm:$0xf]
  %v16 = vld [vmem:[%s0 + $0x8] sm:$0xf]
  %v17 = vld [vmem:[%s0 + $0xc] sm:$0xf]
  %v18 = vld [vmem:[%s0 + $0x10] sm:$0xf]
  %v19 = vld [vmem:[%s0 + $0x14] sm:$0xf]
  %v20 = vld [vmem:[%s0 + $0x18] sm:$0xf]
  %v21 = vld [vmem:[%s0 + $0x1c] sm:$0xf]
  %v22 = vld [vmem:[%s0 + $0x20] sm:$0xf]
  %v23 = vld [vmem:[%s0 + $0x24] sm:$0xf]
  %v24 = vld [vmem:[%s0 + $0x28] sm:$0xf]
  %v25 = vld [vmem:[%s0 + $0x2c] sm:$0xf]
  %v26 = vld [vmem:[%s0 + $0x30] sm:$0xf]
  %v27 = vld [vmem:[%s0 + $0x34] sm:$0xf]
  %v28 = vld [vmem:[%s0 + $0x38] sm:$0xf]
  %v29 = vld [vmem:[%s0 + $0x3c] sm:$0xf]
  %v30 = vld [vmem:[%s1] sm:$0xf]
  %v31 = vld [vmem:[%s1 + $0x4] sm:$0xf]
  %v32 = vld [vmem:[%s1 + $0x8] sm:$0xf]
  %v33 = vld [vmem:[%s1 + $0xc] sm:$0xf]
  %v34 = vld [vmem:[%s1 + $0x10] sm:$0xf]
  %v35 = vld [vmem:[%s1 + $0x14] sm:$0xf]
  %v36 = vld [vmem:[%s1 + $0x18] sm:$0xf]
  %v37 = vld [vmem:[%s1 + $0x1c] sm:$0xf]
  %v38 = vld [vmem:[%s1 + $0x20] sm:$0xf]
  %v39 = vld [vmem:[%s1 + $0x24] sm:$0xf]
  %v40 = vld [vmem:[%s1 + $0x28] sm:$0xf]
  %v41 = vld [vmem:[%s1 + $0x2c] sm:$0xf]
  %v42 = vld [vmem:[%s1 + $0x30] sm:$0xf]
  %v43 = vld [vmem:[%s1 + $0x34] sm:$0xf]
  %v44 = vld [vmem:[%s1 + $0x38] sm:$0xf]
  %v45 = vld [vmem:[%s1 + $0x3c] sm:$0xf]
  %v62 = vunpack.c.l.b16 %v14
  %v63 = vunpack.c.l.b16 %v15
  %v64 = vunpack.c.l.b16 %v16
  %v65 = vunpack.c.l.b16 %v17
  %v66 = vunpack.c.l.b16 %v18
  %v67 = vunpack.c.l.b16 %v19
  %v68 = vunpack.c.l.b16 %v20
  %v69 = vunpack.c.l.b16 %v21
  %v70 = vunpack.c.l.b16 %v22
  %v71 = vunpack.c.l.b16 %v23
  %v72 = vunpack.c.l.b16 %v24
  %v73 = vunpack.c.l.b16 %v25
  %v74 = vunpack.c.l.b16 %v26
  %v75 = vunpack.c.l.b16 %v27
  %v76 = vunpack.c.l.b16 %v28
  %v77 = vunpack.c.l.b16 %v29
  %v78 = vpack.c.b16 %v63, %v62
  %v79 = vpack.c.b16 %v65, %v64
  %v80 = vpack.c.b16 %v67, %v66
  %v81 = vpack.c.b16 %v69, %v68
  %v82 = vpack.c.b16 %v71, %v70
  %v83 = vpack.c.b16 %v73, %v72
  %v84 = vpack.c.b16 %v75, %v74
  %v85 = vpack.c.b16 %v77, %v76
  %v110 = vunpack.c.l.b16 %v30
  %v111 = vunpack.c.l.b16 %v31
  %v112 = vunpack.c.l.b16 %v32
  %v113 = vunpack.c.l.b16 %v33
  %v114 = vunpack.c.l.b16 %v34
  %v115 = vunpack.c.l.b16 %v35
  %v116 = vunpack.c.l.b16 %v36
  %v117 = vunpack.c.l.b16 %v37
  %v118 = vunpack.c.l.b16 %v38
  %v119 = vunpack.c.l.b16 %v39
  %v120 = vunpack.c.l.b16 %v40
  %v121 = vunpack.c.l.b16 %v41
  %v122 = vunpack.c.l.b16 %v42
  %v123 = vunpack.c.l.b16 %v43
  %v124 = vunpack.c.l.b16 %v44
  %v125 = vunpack.c.l.b16 %v45
  %v126 = vpack.c.b16 %v111, %v110
  %v127 = vpack.c.b16 %v113, %v112
  %v128 = vpack.c.b16 %v115, %v114
  %v129 = vpack.c.b16 %v117, %v116
  %v130 = vpack.c.b16 %v119, %v118
  %v131 = vpack.c.b16 %v121, %v120
  %v132 = vpack.c.b16 %v123, %v122
  %v133 = vpack.c.b16 %v125, %v124
  %142 = vmatpush.bf16.msra.mxu0 %v133
  %143 = vmatpush.bf16.msra.mxu0 %v132
  %144 = vmatpush.bf16.msra.mxu0 %v131
  %145 = vmatpush.bf16.msra.mxu0 %v130
  %146 = vmatpush.bf16.msra.mxu0 %v129
  %147 = vmatpush.bf16.msra.mxu0 %v128
  %148 = vmatpush.bf16.msra.mxu0 %v127
  %149 = vmatpush.bf16.msra.mxu0 %v126
  %150 = vmatmul.bf16.gmra.mxu0 %v78
  %v151 = vpop.f32.mrf.mxu0
  %v152 = vadd.f32 0.0, %v151
  %v153 = vpop.f32.mrf.mxu0
  %v154 = vadd.f32 0.0, %v153
  %155 = vmatmul.bf16.gmra.mxu0 %v79
  %v156 = vpop.f32.mrf.mxu0
  %v157 = vadd.f32 0.0, %v156
  %v158 = vpop.f32.mrf.mxu0
  %v159 = vadd.f32 0.0, %v158
  %160 = vmatmul.bf16.gmra.mxu0 %v80
  %v161 = vpop.f32.mrf.mxu0
  %v162 = vadd.f32 0.0, %v161
  %v163 = vpop.f32.mrf.mxu0
  %v164 = vadd.f32 0.0, %v163
  %165 = vmatmul.bf16.gmra.mxu0 %v81
  %v166 = vpop.f32.mrf.mxu0
  %v167 = vadd.f32 0.0, %v166
  %v168 = vpop.f32.mrf.mxu0
  %v169 = vadd.f32 0.0, %v168
  %170 = vmatmul.bf16.gmra.mxu0 %v82
  %v171 = vpop.f32.mrf.mxu0
  %v172 = vadd.f32 0.0, %v171
  %v173 = vpop.f32.mrf.mxu0
  %v174 = vadd.f32 0.0, %v173
  %175 = vmatmul.bf16.gmra.mxu0 %v83
  %v176 = vpop.f32.mrf.mxu0
  %v177 = vadd.f32 0.0, %v176
  %v178 = vpop.f32.mrf.mxu0
  %v179 = vadd.f32 0.0, %v178
  %180 = vmatmul.bf16.gmra.mxu0 %v84
  %v181 = vpop.f32.mrf.mxu0
  %v182 = vadd.f32 0.0, %v181
  %v183 = vpop.f32.mrf.mxu0
  %v184 = vadd.f32 0.0, %v183
  %185 = vmatmul.bf16.gmra.mxu0 %v85
  %v186 = vpop.f32.mrf.mxu0
  %v187 = vadd.f32 0.0, %v186
  %v188 = vpop.f32.mrf.mxu0
  %v189 = vadd.f32 0.0, %v188
  %190 = vdwg.mxu0
  %191 = vst [vmem:[%s2] sm:$0xff] %v152
  %192 = vst [vmem:[%s2 + $0x8] sm:$0xff] %v154
  %193 = vst [vmem:[%s2 + $0x10] sm:$0xff] %v157
  %194 = vst [vmem:[%s2 + $0x18] sm:$0xff] %v159
  %195 = vst [vmem:[%s2 + $0x20] sm:$0xff] %v162
  %196 = vst [vmem:[%s2 + $0x28] sm:$0xff] %v164
  %197 = vst [vmem:[%s2 + $0x30] sm:$0xff] %v167
  %198 = vst [vmem:[%s2 + $0x38] sm:$0xff] %v169
  %199 = vst [vmem:[%s2 + $0x40] sm:$0xff] %v172
  %200 = vst [vmem:[%s2 + $0x48] sm:$0xff] %v174
  %201 = vst [vmem:[%s2 + $0x50] sm:$0xff] %v177
  %202 = vst [vmem:[%s2 + $0x58] sm:$0xff] %v179
  %203 = vst [vmem:[%s2 + $0x60] sm:$0xff] %v182
  %204 = vst [vmem:[%s2 + $0x68] sm:$0xff] %v184
  %205 = vst [vmem:[%s2 + $0x70] sm:$0xff] %v187
  %206 = vst [vmem:[%s2 + $0x78] sm:$0xff] %v189
  %v207 = vadd.f32 %v152, %v154
  %v208 = vadd.f32 %v207, %v157
  %v209 = vadd.f32 %v208, %v159
  %v210 = vadd.f32 %v209, %v162
  %v211 = vadd.f32 %v210, %v164
  %v212 = vadd.f32 %v211, %v167
  %v213 = vadd.f32 %v212, %v169
  %v214 = vadd.f32 %v213, %v172
  %v215 = vadd.f32 %v214, %v174
  %v216 = vadd.f32 %v215, %v177
  %v217 = vadd.f32 %v216, %v179
  %v218 = vadd.f32 %v217, %v182
  %v219 = vadd.f32 %v218, %v184
  %v220 = vadd.f32 %v219, %v187
  %v221 = vadd.f32 %v220, %v189
  %v222 = vrot.slane %v221, 4
  %v223 = vadd.f32 %v221, %v222
  %v224 = vrot.slane %v223, 2
  %v225 = vadd.f32 %v223, %v224
  %v226 = vrot.slane %v225, 1
  %v227 = vadd.f32 %v225, %v226
  %v228 = vmul.f32 %v152, %v152
  %v229 = vmul.f32 %v154, %v154
  %v230 = vmul.f32 %v157, %v157
  %v231 = vmul.f32 %v159, %v159
  %v232 = vmul.f32 %v162, %v162
  %v233 = vmul.f32 %v164, %v164
  %v234 = vmul.f32 %v167, %v167
  %v235 = vmul.f32 %v169, %v169
  %v236 = vmul.f32 %v172, %v172
  %v237 = vmul.f32 %v174, %v174
  %v238 = vmul.f32 %v177, %v177
  %v239 = vmul.f32 %v179, %v179
  %v240 = vmul.f32 %v182, %v182
  %v241 = vmul.f32 %v184, %v184
  %v242 = vmul.f32 %v187, %v187
  %v243 = vmul.f32 %v189, %v189
  %v244 = vadd.f32 %v228, %v229
  %v245 = vadd.f32 %v244, %v230
  %v246 = vadd.f32 %v245, %v231
  %v247 = vadd.f32 %v246, %v232
  %v248 = vadd.f32 %v247, %v233
  %v249 = vadd.f32 %v248, %v234
  %v250 = vadd.f32 %v249, %v235
  %v251 = vadd.f32 %v250, %v236
  %v252 = vadd.f32 %v251, %v237
  %v253 = vadd.f32 %v252, %v238
  %v254 = vadd.f32 %v253, %v239
  %v255 = vadd.f32 %v254, %v240
  %v256 = vadd.f32 %v255, %v241
  %v257 = vadd.f32 %v256, %v242
  %v258 = vadd.f32 %v257, %v243
  %v259 = vrot.slane %v258, 4
  %v260 = vadd.f32 %v258, %v259
  %v261 = vrot.slane %v260, 2
  %v262 = vadd.f32 %v260, %v261
  %v263 = vrot.slane %v262, 1
  %v264 = vadd.f32 %v262, %v263
  %265 = vst [vmem:[%s3] sm:$0xff] %v227
  %266 = vst [vmem:[%s4] sm:$0xff] %v264
  // Predicated region
  $region10: #{down_block_forward.6} parent=0 // pred_check
    _
  $region11: #{down_block_forward.6} parent=0 // pred_check_branch
    %268 = sbr.rel (0) target = $region13
  $region12: #{down_block_forward.6} parent=0 // pred_region
    _
  $region13: #{down_block_forward.6} parent=0 // pred_fallthru
    _
  // Predicated region
  $region14: #{down_block_forward.6} parent=0 // pred_check
    _
  $region15: #{down_block_forward.6} parent=0 // pred_check_branch
    %270 = sbr.rel (0) target = $region17
  $region16: #{down_block_forward.6} parent=0 // pred_region
    _
  $region17: #{down_block_forward.6} parent=0 // pred_fallthru
    _
  // Predicated region
  $region18: #{down_block_forward.6} parent=0 // pred_check
    _
  $region19: #{down_block_forward.6} parent=0 // pred_check_branch
    %272 = sbr.rel (0) target = $region21
  $region20: #{down_block_forward.6} parent=0 // pred_region
    _
  $region21: #{down_block_forward.6} parent=0 // pred_fallthru
    _
  // Predicated region
  $region22: #{down_block_forward.6} parent=0 // pred_check
    _
  $region23: #{down_block_forward.6} parent=0 // pred_check_branch
    %274 = sbr.rel (0) target = $region25
  $region24: #{down_block_forward.6} parent=0 // pred_region
    _
  $region25: #{down_block_forward.6} parent=0 // pred_fallthru
    _
  // Predicated region
  $region26: #{down_block_forward.6} parent=0 // pred_check
    _
  $region27: #{down_block_forward.6} parent=0 // pred_check_branch
    %276 = sbr.rel (0) target = $region29
  $region28: #{down_block_forward.6} parent=0 // pred_region
    _
  $region29: #{down_block_forward.6} parent=0 // pred_fallthru
    _
  // Predicated region
  $region30: #{down_block_forward.6} parent=0 // pred_check
    _
  $region31: #{down_block_forward.6} parent=0 // pred_check_branch
    %278 = sbr.rel (0) target = $region33
  $region32: #{down_block_forward.6} parent=0 // pred_region
    _
  $region33: #{down_block_forward.6} parent=0 // pred_fallthru
    _

// kernel: down_block_forward.7
$region0: #{down_block_forward.7}
  #allocation0 [shape = 'u32[]', space=smem, size = 0x4, offset = 0x4, fixed_abs, tag = 'smem constant byte address 0x4 - core index']
  #allocation1 [shape = 'u32[72,128]{1,0:T(1,128)}', space=vmem, size = 0x9000, scoped, tag = 'internal scratch']
  %s0 = inlined_call_operand.vmem [shape: f32[128,128], index: 0, kind: input, shape index: {}]
  %s1 = inlined_call_operand.vmem [shape: f32[1,128], index: 1, kind: input, shape index: {}]
  %s2 = inlined_call_operand.vmem [shape: f32[1,128], index: 2, kind: input, shape index: {}]
  %s3 = inlined_call_operand.vmem [shape: f32[128,128], index: 3, kind: output, shape index: {}]
  %s4 = sld [smem:[#allocation0]]
  $region22: #{down_block_forward.7} parent=0
    _
  %s6 = ssub.s32 1, %s4
  %s7 = scalar_select 0, %s6, %s4
  // Predicated region
  $region2: #{down_block_forward.7} parent=0 // pred_check
    _
  $region3: #{down_block_forward.7} parent=0 // pred_check_branch
    %9 = sbr.rel (0) target = $region5
  $region4: #{down_block_forward.7} parent=0 // pred_region
    _
  $region5: #{down_block_forward.7} parent=0 // pred_fallthru
    _
  // Predicated region
  $region6: #{down_block_forward.7} parent=0 // pred_check
    _
  $region7: #{down_block_forward.7} parent=0 // pred_check_branch
    %11 = sbr.rel (0) target = $region9
  $region8: #{down_block_forward.7} parent=0 // pred_region
    _
  $region9: #{down_block_forward.7} parent=0 // pred_fallthru
    _
  // Predicated region
  $region10: #{down_block_forward.7} parent=0 // pred_check
    _
  $region11: #{down_block_forward.7} parent=0 // pred_check_branch
    %13 = sbr.rel (0) target = $region13
  $region12: #{down_block_forward.7} parent=0 // pred_region
    _
  $region13: #{down_block_forward.7} parent=0 // pred_fallthru
    _
  %v14 = vld [vmem:[%s0] sm:$0xff]
  %v15 = vld [vmem:[%s0 + $0x8] sm:$0xff]
  %v16 = vld [vmem:[%s0 + $0x10] sm:$0xff]
  %v17 = vld [vmem:[%s0 + $0x18] sm:$0xff]
  %v18 = vld [vmem:[%s0 + $0x20] sm:$0xff]
  %v19 = vld [vmem:[%s0 + $0x28] sm:$0xff]
  %v20 = vld [vmem:[%s0 + $0x30] sm:$0xff]
  %v21 = vld [vmem:[%s0 + $0x38] sm:$0xff]
  %v22 = vld [vmem:[%s0 + $0x40] sm:$0xff]
  %v23 = vld [vmem:[%s0 + $0x48] sm:$0xff]
  %v24 = vld [vmem:[%s0 + $0x50] sm:$0xff]
  %v25 = vld [vmem:[%s0 + $0x58] sm:$0xff]
  %v26 = vld [vmem:[%s0 + $0x60] sm:$0xff]
  %v27 = vld [vmem:[%s0 + $0x68] sm:$0xff]
  %v28 = vld [vmem:[%s0 + $0x70] sm:$0xff]
  %v29 = vld [vmem:[%s0 + $0x78] sm:$0xff]
  %v30 = vld [vmem:[%s1] sm:$0x1]
  %v32 = vperm.slane %v30, 0
  %v34 = vmul.f32 %v14, %v32
  %v35 = vmul.f32 %v15, %v32
  %v36 = vmul.f32 %v16, %v32
  %v37 = vmul.f32 %v17, %v32
  %v38 = vmul.f32 %v18, %v32
  %v39 = vmul.f32 %v19, %v32
  %v40 = vmul.f32 %v20, %v32
  %v41 = vmul.f32 %v21, %v32
  %v42 = vmul.f32 %v22, %v32
  %v43 = vmul.f32 %v23, %v32
  %v44 = vmul.f32 %v24, %v32
  %v45 = vmul.f32 %v25, %v32
  %v46 = vmul.f32 %v26, %v32
  %v47 = vmul.f32 %v27, %v32
  %v48 = vmul.f32 %v28, %v32
  %v49 = vmul.f32 %v29, %v32
  %v50 = vld [vmem:[%s2] sm:$0x1]
  %v52 = vperm.slane %v50, 0
  %v54 = vadd.f32 %v34, %v52
  %v55 = vadd.f32 %v35, %v52
  %v56 = vadd.f32 %v36, %v52
  %v57 = vadd.f32 %v37, %v52
  %v58 = vadd.f32 %v38, %v52
  %v59 = vadd.f32 %v39, %v52
  %v60 = vadd.f32 %v40, %v52
  %v61 = vadd.f32 %v41, %v52
  %v62 = vadd.f32 %v42, %v52
  %v63 = vadd.f32 %v43, %v52
  %v64 = vadd.f32 %v44, %v52
  %v65 = vadd.f32 %v45, %v52
  %v66 = vadd.f32 %v46, %v52
  %v67 = vadd.f32 %v47, %v52
  %v68 = vadd.f32 %v48, %v52
  %v69 = vadd.f32 %v49, %v52
  %vm70 = vcmp.gt.f32.partialorder %v54, 0.0
  %vm71 = vcmp.gt.f32.partialorder %v55, 0.0
  %vm72 = vcmp.gt.f32.partialorder %v56, 0.0
  %vm73 = vcmp.gt.f32.partialorder %v57, 0.0
  %vm74 = vcmp.gt.f32.partialorder %v58, 0.0
  %vm75 = vcmp.gt.f32.partialorder %v59, 0.0
  %vm76 = vcmp.gt.f32.partialorder %v60, 0.0
  %vm77 = vcmp.gt.f32.partialorder %v61, 0.0
  %vm78 = vcmp.gt.f32.partialorder %v62, 0.0
  %vm79 = vcmp.gt.f32.partialorder %v63, 0.0
  %vm80 = vcmp.gt.f32.partialorder %v64, 0.0
  %vm81 = vcmp.gt.f32.partialorder %v65, 0.0
  %vm82 = vcmp.gt.f32.partialorder %v66, 0.0
  %vm83 = vcmp.gt.f32.partialorder %v67, 0.0
  %vm84 = vcmp.gt.f32.partialorder %v68, 0.0
  %vm85 = vcmp.gt.f32.partialorder %v69, 0.0
  %v86 = vmul.f32 %v54, 0.2
  %v87 = vmul.f32 %v55, 0.2
  %v88 = vmul.f32 %v56, 0.2
  %v89 = vmul.f32 %v57, 0.2
  %v90 = vmul.f32 %v58, 0.2
  %v91 = vmul.f32 %v59, 0.2
  %v92 = vmul.f32 %v60, 0.2
  %v93 = vmul.f32 %v61, 0.2
  %v94 = vmul.f32 %v62, 0.2
  %v95 = vmul.f32 %v63, 0.2
  %v96 = vmul.f32 %v64, 0.2
  %v97 = vmul.f32 %v65, 0.2
  %v98 = vmul.f32 %v66, 0.2
  %v99 = vmul.f32 %v67, 0.2
  %v100 = vmul.f32 %v68, 0.2
  %v101 = vmul.f32 %v69, 0.2
  %v102 = vsel %vm70, %v54, %v86
  %v103 = vsel %vm71, %v55, %v87
  %v104 = vsel %vm72, %v56, %v88
  %v105 = vsel %vm73, %v57, %v89
  %v106 = vsel %vm74, %v58, %v90
  %v107 = vsel %vm75, %v59, %v91
  %v108 = vsel %vm76, %v60, %v92
  %v109 = vsel %vm77, %v61, %v93
  %v110 = vsel %vm78, %v62, %v94
  %v111 = vsel %vm79, %v63, %v95
  %v112 = vsel %vm80, %v64, %v96
  %v113 = vsel %vm81, %v65, %v97
  %v114 = vsel %vm82, %v66, %v98
  %v115 = vsel %vm83, %v67, %v99
  %v116 = vsel %vm84, %v68, %v100
  %v117 = vsel %vm85, %v69, %v101
  %118 = vst [vmem:[%s3] sm:$0xff] %v102
  %119 = vst [vmem:[%s3 + $0x8] sm:$0xff] %v103
  %120 = vst [vmem:[%s3 + $0x10] sm:$0xff] %v104
  %121 = vst [vmem:[%s3 + $0x18] sm:$0xff] %v105
  %122 = vst [vmem:[%s3 + $0x20] sm:$0xff] %v106
  %123 = vst [vmem:[%s3 + $0x28] sm:$0xff] %v107
  %124 = vst [vmem:[%s3 + $0x30] sm:$0xff] %v108
  %125 = vst [vmem:[%s3 + $0x38] sm:$0xff] %v109
  %126 = vst [vmem:[%s3 + $0x40] sm:$0xff] %v110
  %127 = vst [vmem:[%s3 + $0x48] sm:$0xff] %v111
  %128 = vst [vmem:[%s3 + $0x50] sm:$0xff] %v112
  %129 = vst [vmem:[%s3 + $0x58] sm:$0xff] %v113
  %130 = vst [vmem:[%s3 + $0x60] sm:$0xff] %v114
  %131 = vst [vmem:[%s3 + $0x68] sm:$0xff] %v115
  %132 = vst [vmem:[%s3 + $0x70] sm:$0xff] %v116
  %133 = vst [vmem:[%s3 + $0x78] sm:$0xff] %v117
  // Predicated region
  $region14: #{down_block_forward.7} parent=0 // pred_check
    _
  $region15: #{down_block_forward.7} parent=0 // pred_check_branch
    %135 = sbr.rel (0) target = $region17
  $region16: #{down_block_forward.7} parent=0 // pred_region
    _
  $region17: #{down_block_forward.7} parent=0 // pred_fallthru
    _
  // Predicated region
  $region18: #{down_block_forward.7} parent=0 // pred_check
    _
  $region19: #{down_block_forward.7} parent=0 // pred_check_branch
    %137 = sbr.rel (0) target = $region21
  $region20: #{down_block_forward.7} parent=0 // pred_region
    _
  $region21: #{down_block_forward.7} parent=0 // pred_fallthru
    _

</llo_original>
